<compile_context>
chip_gen: v7x
topology: tpu7x:2x2x1
jax: 0.10.0
libtpu: 0.0.40
codegen_flags: <defaults>
</compile_context>

<pallas_src>
import functools

import jax
import jax.numpy as jnp
from jax import lax
from jax.experimental import pallas as pl
from jax.experimental.pallas import tpu as pltpu


def _round_up(x, m):
    return ((x + m - 1) // m) * m


def _conv_bn_kernel(x_ref, w_ref, shift_ref, o_ref, *,
                    KH, KW, dil, W_row, tile_axis, fold_taps):
    # x_ref:     (H_alloc * W_row, Cp)   one zero-padded NHWC image, spatially flattened
    # w_ref:     fold_taps -> (KH*KW*Cp, Coutp)   else (KH, KW, Cp, Coutp)
    # shift_ref: (1, Coutp) f32          folded BN shift
    # o_ref:     (th * W_row, Coutp)     lane-dense output tile, written once
    M = o_ref.shape[0]                                    # = th * W_row
    # th*W_row and W_row are multiples of 8 -> the (tile, kh) row component is aligned.
    row0 = pl.multiple_of(pl.program_id(tile_axis) * M, 8)

    if fold_taps:
        # Implicit im2col in VMEM: data is already resident; one big-K MXU dot.
        pieces = []
        for kh in range(KH):
            base_kh = row0 + kh * dil * W_row             # still a multiple of 8
            for kw in range(KW):
                pieces.append(x_ref[pl.ds(base_kh + kw * dil, M), :])
        slab = jnp.concatenate(pieces, axis=-1) if len(pieces) > 1 else pieces[0]
        acc = jnp.dot(slab, w_ref[...], preferred_element_type=jnp.float32)
    else:
        # Large-C path: per-tap dots already fill the MXU; chain a local accumulator
        # (partials live in vregs / MRB, not in VMEM).
        acc = jnp.zeros(o_ref.shape, jnp.float32)
        for kh in range(KH):
            base_kh = row0 + kh * dil * W_row
            for kw in range(KW):
                piece = x_ref[pl.ds(base_kh + kw * dil, M), :]
                acc = acc + jnp.dot(piece, w_ref[kh, kw],
                                    preferred_element_type=jnp.float32)

    # Single epilogue: BN shift add + cast + one full-width store of the tile.
    o_ref[...] = (acc + shift_ref[...]).astype(o_ref.dtype)


def _implicit_gemm_conv_bn(x_nhwc, w_hwio, shift, *, padding, dilation,
                           compute_dtype, out_dtype, target_rows=1024):
    """Fused stride-1 conv + BN shift. x_nhwc: (N,H,W,C); w_hwio: (KH,KW,C,Cout)."""
    N, H, W, C = x_nhwc.shape
    KH, KW, Cin, Cout = w_hwio.shape
    assert Cin == C

    OH = H + 2 * padding - dilation * (KH - 1)
    OW = W + 2 * padding - dilation * (KW - 1)
    assert OH >= 1 and OW >= 1

    cdt = jnp.dtype(compute_dtype if compute_dtype is not None else x_nhwc.dtype)
    odt = jnp.dtype(out_dtype if out_dtype is not None else x_nhwc.dtype)
    sub = max(8, 32 // cdt.itemsize)          # dtype-aware second-minor packing (8/16/32)
    Cp = _round_up(C, sub)
    Coutp = _round_up(Cout, 128)              # lane-dense output channels
    W_row = _round_up(W + 2 * padding, 8)     # sublane-aligned row pitch

    # Output-row tile: ~target_rows GEMM rows per grid step.
    th = max(1, min(OH, target_rows // W_row))
    n_t = -(-OH // th)
    OH_t = n_t * th

    # Exact halo: the last tap slice ends at (OH_t + dil*(KH-1))*W_row + dil*(KW-1).
    overhang = -(-((KW - 1) * dilation) // W_row)
    H_alloc = OH_t + dilation * (KH - 1) + overhang
    assert (OH_t + dilation * (KH - 1)) * W_row + (KW - 1) * dilation <= H_alloc * W_row
    assert H_alloc >= H + padding

    x_p = jnp.pad(x_nhwc, ((0, 0),
                           (padding, H_alloc - H - padding),
                           (padding, W_row - W - padding),
                           (0, Cp - C)))
    x_p = x_p.reshape(N, H_alloc * W_row, Cp).astype(cdt)

    w_p = jnp.pad(w_hwio, ((0, 0), (0, 0), (0, Cp - C), (0, Coutp - Cout))).astype(cdt)
    shift_p = jnp.pad(shift.reshape(1, Cout).astype(jnp.float32),
                      ((0, 0), (0, Coutp - Cout)))

    # Fold the taps into the contraction when Cp underfills the MXU K dimension.
    fold_taps = (KH * KW > 1) and (Cp < 256) and (KH * KW * Cp <= 4096)
    if fold_taps:
        w_arg = w_p.reshape(KH * KW * Cp, Coutp)
        w_spec_shape = (KH * KW * Cp, Coutp)
    else:
        w_arg = w_p
        w_spec_shape = (KH, KW, Cp, Coutp)

    HWa = H_alloc * W_row
    M_blk = th * W_row

    if N == 1:
        # Batch-1: shard the row-tile axis (v7x megacore splits the leading grid axis).
        grid = (n_t,)
        x_map = lambda t: (0, 0, 0)
        w_map = (lambda t: (0, 0)) if fold_taps else (lambda t: (0, 0, 0, 0))
        s_map = lambda t: (0, 0)
        o_map = lambda t: (0, t, 0)
        dims = ("parallel",)
        tile_axis = 0
    else:
        grid = (N, n_t)
        x_map = lambda n, t: (n, 0, 0)
        w_map = (lambda n, t: (0, 0)) if fold_taps else (lambda n, t: (0, 0, 0, 0))
        s_map = lambda n, t: (0, 0)
        o_map = lambda n, t: (n, t, 0)
        dims = ("parallel", "parallel")
        tile_axis = 1

    # Per-step VMEM estimate (double-buffered blocks + in-kernel slab + f32 acc);
    # raise the scoped limit above the v5e 16 MiB / default 32 MiB ceiling, but cap
    # at 64 MiB so the setting is valid on v7x as well.
    csz = cdt.itemsize
    est = (2 * HWa * Cp * csz
           + 2 * int(w_arg.size) * csz
           + 2 * int(shift_p.size) * 4
           + 2 * M_blk * Coutp * odt.itemsize
           + M_blk * Coutp * 4
           + (M_blk * KH * KW * Cp * csz if fold_taps else 0))
    vmem_limit = int(min(max(2 * est, 32 << 20), 64 << 20))

    kernel = functools.partial(_conv_bn_kernel, KH=KH, KW=KW, dil=dilation,
                               W_row=W_row, tile_axis=tile_axis, fold_taps=fold_taps)
    out = pl.pallas_call(
        kernel,
        out_shape=jax.ShapeDtypeStruct((N, OH_t * W_row, Coutp), odt),
        grid_spec=pltpu.PrefetchScalarGridSpec(
            num_scalar_prefetch=0,
            grid=grid,
            in_specs=[
                pl.BlockSpec((None, HWa, Cp), x_map),
                pl.BlockSpec(w_spec_shape, w_map),
                pl.BlockSpec((1, Coutp), s_map),
            ],
            out_specs=pl.BlockSpec((None, M_blk, Coutp), o_map),
        ),
        compiler_params=pltpu.CompilerParams(
            dimension_semantics=dims,
            vmem_limit_bytes=vmem_limit),
    )(x_p, w_arg, shift_p)

    out = out.reshape(N, OH_t, W_row, Coutp)
    return out[:, :OH, :OW, :Cout]            # drop row / width / channel padding


def basic_conv2d(x, weight, gamma, beta, running_mean, running_var, *,
                 stride=1, padding=0, dilation=1, eps=1e-5,
                 in_layout="NCHW", out_layout="NCHW",
                 compute_dtype=jnp.bfloat16, out_dtype=None, target_rows=1024):
    """Conv2d(bias=False) + BatchNorm2d (eval).  x: (N,C,H,W) (or NHWC), weight (Cout,Cin,KH,KW)."""
    Cout, Cin, KH, KW = weight.shape
    if in_layout == "NHWC":
        N, H, W, C = x.shape
    else:
        N, C, H, W = x.shape
    assert Cin == C

    # Fold eval-mode BN into a per-output-channel scale/shift; fold the scale into the
    # conv weight (in f32) so the kernel epilogue is a single per-channel add.
    scale = gamma / jnp.sqrt(running_var + eps)          # (Cout,)
    shift = beta - running_mean * scale                  # (Cout,)
    out_dtype = x.dtype if out_dtype is None else out_dtype

    if stride == 1:
        x_nhwc = x if in_layout == "NHWC" else jnp.transpose(x, (0, 2, 3, 1))
        w_hwio = jnp.transpose(weight, (2, 3, 1, 0)) * scale   # (KH,KW,Cin,Cout), scaled
        out_nhwc = _implicit_gemm_conv_bn(
            x_nhwc, w_hwio, shift, padding=padding, dilation=dilation,
            compute_dtype=compute_dtype, out_dtype=out_dtype, target_rows=target_rows)
    else:
        # TODO(synk): strided conv uses channel-last patches fed through the same fused
        # kernel as a 1x1 conv, not a fully implicit strided GEMM.
        patches = lax.conv_general_dilated_patches(
            x, filter_shape=(KH, KW), window_strides=(stride, stride),
            padding=((padding, padding), (padding, padding)),
            rhs_dilation=(dilation, dilation),
            dimension_numbers=(in_layout, "OIHW", "NHWC"))      # (N,OH,OW,Cin*KH*KW)
        K = Cin * KH * KW
        w_k = (weight.reshape(Cout, K).T * scale).reshape(1, 1, K, Cout)
        out_nhwc = _implicit_gemm_conv_bn(
            patches, w_k, shift, padding=0, dilation=1,
            compute_dtype=compute_dtype, out_dtype=out_dtype, target_rows=target_rows)

    if out_layout == "NHWC":
        return out_nhwc          # skips the final relayout when the consumer allows it
    return jnp.transpose(out_nhwc, (0, 3, 1, 2))


if __name__ == "__main__":
    # BasicConv2d(in_planes=4, out_planes=8, kernel_size=3, padding=1)
    N, Cin, H, W = 2, 4, 16, 16
    Cout, KH, KW = 8, 3, 3
    eps = 1e-5

    key = jax.random.PRNGKey(0)
    k_x, k_w, k_g, k_b, k_m, k_v = jax.random.split(key, 6)
    x = jax.random.normal(k_x, (N, Cin, H, W), dtype=jnp.float32)
    weight = jax.random.normal(k_w, (Cout, Cin, KH, KW), dtype=jnp.float32) * 0.1
    gamma = jax.random.normal(k_g, (Cout,), dtype=jnp.float32) * 0.1 + 1.0
    beta = jax.random.normal(k_b, (Cout,), dtype=jnp.float32) * 0.1
    running_mean = jax.random.normal(k_m, (Cout,), dtype=jnp.float32) * 0.1
    running_var = jax.random.uniform(k_v, (Cout,), dtype=jnp.float32,
                                     minval=0.5, maxval=1.5)

    def reference(stride, padding, dilation):
        conv = lax.conv_general_dilated(
            x, weight, window_strides=(stride, stride),
            padding=((padding, padding), (padding, padding)),
            rhs_dilation=(dilation, dilation),
            dimension_numbers=("NCHW", "OIHW", "NCHW"),
            precision=lax.Precision.HIGHEST)
        return ((conv - running_mean[None, :, None, None])
                / jnp.sqrt(running_var[None, :, None, None] + eps)
                * gamma[None, :, None, None] + beta[None, :, None, None])

    # 1) stride=1, padding=1: exercises the folded-tap implicit-GEMM path (f32 operands).
    fn_f32 = jax.jit(functools.partial(
        basic_conv2d, stride=1, padding=1, dilation=1, eps=eps,
        compute_dtype=jnp.float32))
    out = jax.block_until_ready(fn_f32(x, weight, gamma, beta, running_mean, running_var))
    ref = reference(1, 1, 1)
    assert out.shape == (N, Cout, H, W), out.shape
    assert jnp.allclose(out, ref, atol=1e-3, rtol=1e-3)

    # 2) stride=2 path (patch-GEMM fallback), verified numerically per review.
    fn_s2 = jax.jit(functools.partial(
        basic_conv2d, stride=2, padding=1, dilation=1, eps=eps,
        compute_dtype=jnp.float32))
    out2 = jax.block_until_ready(fn_s2(x, weight, gamma, beta, running_mean, running_var))
    ref2 = reference(2, 1, 1)
    assert out2.shape == (N, Cout, 8, 8), out2.shape
    assert jnp.allclose(out2, ref2, atol=1e-3, rtol=1e-3)

    # 3) default bf16-operand production path (looser tolerance for operand rounding).
    fn_bf16 = jax.jit(functools.partial(
        basic_conv2d, stride=1, padding=1, dilation=1, eps=eps))
    out3 = jax.block_until_ready(fn_bf16(x, weight, gamma, beta, running_mean, running_var))
    assert out3.shape == (N, Cout, H, W), out3.shape
    assert jnp.allclose(out3, ref, atol=3e-2, rtol=3e-2)

    print("KERNEL_OK")
</pallas_src>

<mosaic_0001>
module attributes {stable_mosaic.version = 11 : i64} {
  func.func @_conv_bn_kernel(%arg0: i32, %arg1: i32, %arg2: memref<1x456x8xf32, #tpu.memory_space<vmem>>, %arg3: memref<72x128xf32, #tpu.memory_space<vmem>>, %arg4: memref<1x128xf32, #tpu.memory_space<vmem>>, %arg5: memref<1x384x128xf32, #tpu.memory_space<vmem>>) attributes {dimension_semantics = [#tpu.dimension_semantics<parallel>, #tpu.dimension_semantics<parallel>], iteration_bounds = array<i64: 2, 1>, scalar_prefetch = 0 : i64, scratch_operands = 0 : i64, tpu.core_type = #tpu.core_type<tc>, window_params = [{transform_indices = @transform_0, window_bounds = array<i64: 1, 456, 8>}, {pipeline_mode = #tpu.pipeline_mode<synchronous>, transform_indices = @transform_1, window_bounds = array<i64: 72, 128>}, {pipeline_mode = #tpu.pipeline_mode<synchronous>, transform_indices = @transform_2, window_bounds = array<i64: 1, 128>}, {transform_indices = @transform_3, window_bounds = array<i64: 1, 384, 128>}]} {
    %c384_i32 = arith.constant 384 : i32
    %0 = arith.muli %arg1, %c384_i32 : i32
    %1 = tpu.assume_multiple %0, 8 : i32
    %c0_i32 = arith.constant 0 : i32
    %2 = arith.addi %1, %c0_i32 : i32
    %c0_i32_0 = arith.constant 0 : i32
    %3 = arith.addi %2, %c0_i32_0 : i32
    %c0 = arith.constant 0 : index
    %4 = arith.index_cast %3 : i32 to index
    %c0_1 = arith.constant 0 : index
    %5 = vector.load %arg2[%c0, %4, %c0_1] : memref<1x456x8xf32, #tpu.memory_space<vmem>>, vector<1x384x8xf32>
    %6 = vector.shape_cast %5 : vector<1x384x8xf32> to vector<384x8xf32>
    %c1_i32 = arith.constant 1 : i32
    %7 = arith.addi %2, %c1_i32 : i32
    %c0_2 = arith.constant 0 : index
    %8 = arith.index_cast %7 : i32 to index
    %c0_3 = arith.constant 0 : index
    %9 = vector.load %arg2[%c0_2, %8, %c0_3] : memref<1x456x8xf32, #tpu.memory_space<vmem>>, vector<1x384x8xf32>
    %10 = vector.shape_cast %9 : vector<1x384x8xf32> to vector<384x8xf32>
    %c2_i32 = arith.constant 2 : i32
    %11 = arith.addi %2, %c2_i32 : i32
    %c0_4 = arith.constant 0 : index
    %12 = arith.index_cast %11 : i32 to index
    %c0_5 = arith.constant 0 : index
    %13 = vector.load %arg2[%c0_4, %12, %c0_5] : memref<1x456x8xf32, #tpu.memory_space<vmem>>, vector<1x384x8xf32>
    %14 = vector.shape_cast %13 : vector<1x384x8xf32> to vector<384x8xf32>
    %c24_i32 = arith.constant 24 : i32
    %15 = arith.addi %1, %c24_i32 : i32
    %c0_i32_6 = arith.constant 0 : i32
    %16 = arith.addi %15, %c0_i32_6 : i32
    %c0_7 = arith.constant 0 : index
    %17 = arith.index_cast %16 : i32 to index
    %c0_8 = arith.constant 0 : index
    %18 = vector.load %arg2[%c0_7, %17, %c0_8] : memref<1x456x8xf32, #tpu.memory_space<vmem>>, vector<1x384x8xf32>
    %19 = vector.shape_cast %18 : vector<1x384x8xf32> to vector<384x8xf32>
    %c1_i32_9 = arith.constant 1 : i32
    %20 = arith.addi %15, %c1_i32_9 : i32
    %c0_10 = arith.constant 0 : index
    %21 = arith.index_cast %20 : i32 to index
    %c0_11 = arith.constant 0 : index
    %22 = vector.load %arg2[%c0_10, %21, %c0_11] : memref<1x456x8xf32, #tpu.memory_space<vmem>>, vector<1x384x8xf32>
    %23 = vector.shape_cast %22 : vector<1x384x8xf32> to vector<384x8xf32>
    %c2_i32_12 = arith.constant 2 : i32
    %24 = arith.addi %15, %c2_i32_12 : i32
    %c0_13 = arith.constant 0 : index
    %25 = arith.index_cast %24 : i32 to index
    %c0_14 = arith.constant 0 : index
    %26 = vector.load %arg2[%c0_13, %25, %c0_14] : memref<1x456x8xf32, #tpu.memory_space<vmem>>, vector<1x384x8xf32>
    %27 = vector.shape_cast %26 : vector<1x384x8xf32> to vector<384x8xf32>
    %c48_i32 = arith.constant 48 : i32
    %28 = arith.addi %1, %c48_i32 : i32
    %c0_i32_15 = arith.constant 0 : i32
    %29 = arith.addi %28, %c0_i32_15 : i32
    %c0_16 = arith.constant 0 : index
    %30 = arith.index_cast %29 : i32 to index
    %c0_17 = arith.constant 0 : index
    %31 = vector.load %arg2[%c0_16, %30, %c0_17] : memref<1x456x8xf32, #tpu.memory_space<vmem>>, vector<1x384x8xf32>
    %32 = vector.shape_cast %31 : vector<1x384x8xf32> to vector<384x8xf32>
    %c1_i32_18 = arith.constant 1 : i32
    %33 = arith.addi %28, %c1_i32_18 : i32
    %c0_19 = arith.constant 0 : index
    %34 = arith.index_cast %33 : i32 to index
    %c0_20 = arith.constant 0 : index
    %35 = vector.load %arg2[%c0_19, %34, %c0_20] : memref<1x456x8xf32, #tpu.memory_space<vmem>>, vector<1x384x8xf32>
    %36 = vector.shape_cast %35 : vector<1x384x8xf32> to vector<384x8xf32>
    %c2_i32_21 = arith.constant 2 : i32
    %37 = arith.addi %28, %c2_i32_21 : i32
    %c0_22 = arith.constant 0 : index
    %38 = arith.index_cast %37 : i32 to index
    %c0_23 = arith.constant 0 : index
    %39 = vector.load %arg2[%c0_22, %38, %c0_23] : memref<1x456x8xf32, #tpu.memory_space<vmem>>, vector<1x384x8xf32>
    %40 = vector.shape_cast %39 : vector<1x384x8xf32> to vector<384x8xf32>
    %41 = tpu.concatenate %6, %10, %14, %19, %23, %27, %32, %36, %40 in 1 : vector<384x8xf32>, vector<384x8xf32>, vector<384x8xf32>, vector<384x8xf32>, vector<384x8xf32>, vector<384x8xf32>, vector<384x8xf32>, vector<384x8xf32>, vector<384x8xf32> -> vector<384x72xf32>
    %c0_24 = arith.constant 0 : index
    %c0_25 = arith.constant 0 : index
    %42 = vector.load %arg3[%c0_24, %c0_25] : memref<72x128xf32, #tpu.memory_space<vmem>>, vector<72x128xf32>
    %cst = arith.constant dense<0.000000e+00> : vector<384x128xf32>
    %43 = tpu.matmul %41, %42, %cst {dimension_numbers = #tpu.dot_dimension_numbers<[1], [0], [0], [1], [0, 0, 1, 1], [], []>} : vector<384x72xf32>, vector<72x128xf32>, vector<384x128xf32> -> vector<384x128xf32>
    %c0_26 = arith.constant 0 : index
    %c0_27 = arith.constant 0 : index
    %44 = vector.load %arg4[%c0_26, %c0_27] : memref<1x128xf32, #tpu.memory_space<vmem>>, vector<1x128xf32>
    %45 = vector.broadcast %44 : vector<1x128xf32> to vector<384x128xf32>
    %46 = arith.addf %43, %45 : vector<384x128xf32>
    %c0_28 = arith.constant 0 : index
    %c0_29 = arith.constant 0 : index
    %c0_30 = arith.constant 0 : index
    %47 = vector.load %arg5[%c0_28, %c0_29, %c0_30] : memref<1x384x128xf32, #tpu.memory_space<vmem>>, vector<1x384x128xf32>
    %48 = vector.shape_cast %47 : vector<1x384x128xf32> to vector<384x128xf32>
    %49 = vector.shape_cast %46 : vector<384x128xf32> to vector<1x384x128xf32>
    tpu.vector_store %arg5[%c0_28, %c0_29, %c0_30], %49 {strides = array<i32>} : memref<1x384x128xf32, #tpu.memory_space<vmem>>, vector<1x384x128xf32>,
    return
  }
  func.func @transform_0(%arg0: i32, %arg1: i32) -> (i32, i32, i32) {
    %c0_i32 = arith.constant 0 : i32
    %c0_i32_0 = arith.constant 0 : i32
    %c0_i32_1 = arith.constant 0 : i32
    return %arg0, %c0_i32, %c0_i32_0 : i32, i32, i32
  }
  func.func @transform_1(%arg0: i32, %arg1: i32) -> (i32, i32) {
    %c0_i32 = arith.constant 0 : i32
    %c0_i32_0 = arith.constant 0 : i32
    %c0_i32_1 = arith.constant 0 : i32
    return %c0_i32, %c0_i32_0 : i32, i32
  }
  func.func @transform_2(%arg0: i32, %arg1: i32) -> (i32, i32) {
    %c0_i32 = arith.constant 0 : i32
    %c0_i32_0 = arith.constant 0 : i32
    %c0_i32_1 = arith.constant 0 : i32
    return %c0_i32, %c0_i32_0 : i32, i32
  }
  func.func @transform_3(%arg0: i32, %arg1: i32) -> (i32, i32, i32) {
    %c0_i32 = arith.constant 0 : i32
    %c0_i32_0 = arith.constant 0 : i32
    return %arg0, %arg1, %c0_i32 : i32, i32, i32
  }
}

</mosaic_0001>

<llo_original>
// kernel: basic_conv2d.1
$region0: #{basic_conv2d.1}
  #allocation0 [shape = 'u32[]', space=smem, size = 0x4, offset = 0x4, fixed_abs, tag = 'smem constant byte address 0x4 - core index']
  #allocation1 [shape = 'u32[144,128]{1,0:T(1,128)}', space=vmem, size = 0x12000, scoped, tag = 'internal scratch']
  %s0 = inlined_call_operand.vmem [shape: f32[2,456,8], index: 0, kind: input, shape index: {}]
  %s1 = inlined_call_operand.vmem [shape: f32[72,128], index: 1, kind: input, shape index: {}]
  %s2 = inlined_call_operand.vmem [shape: f32[1,128], index: 2, kind: input, shape index: {}]
  %s3 = inlined_call_operand.vmem [shape: f32[2,384,128], index: 3, kind: output, shape index: {}]
  %s4 = sld [smem:[#allocation0]]
  $region45: #{basic_conv2d.1} parent=0
    _
  %s6 = ssub.s32 1, %s4
  %s7 = scalar_select 0, %s6, %s4
  loop: start=0, step=1, limit=4
  $region2: #{basic_conv2d.1} parent=0 // loop_pre_header
    _
  $region3: #{basic_conv2d.1} parent=0 // loop_header
    %s9 = sphi 0, %s13
    %p10 = scmp.ge.s32.totalorder %s9, 4
    %s16 = sphi 0, %s28
    %s17 = sphi 0, %s24
    %s18 = sphi 0, %s16
    %s19 = sphi 0, %s17
    %s20 = sphi 0, %s18
    %s21 = sphi 0, %s19
    %s31 = sphi 0, %s33
    %s34 = sphi 0, %s31
    %s35 = sphi 0, %s34
    %s51 = sphi 0, %s35
    %s55 = sphi 0, %s55
    %s57 = sphi 0, %s55
    %s58 = sphi 0, %s57
    %s72 = sphi 0, %s58
    %s76 = sphi 0, %s76
    %s78 = sphi 0, %s76
    %s79 = sphi 0, %s78
    %s93 = sphi 0, %s79
    %s101 = sphi 0, %s103
    %s104 = sphi 0, %s101
    %s105 = sphi 0, %s104
    %s121 = sphi 0, %s105
  $region4: #{basic_conv2d.1} parent=0 // loop_header_branch
    %12 = sbr.rel (%p10) target = $region8
  $region5: #{basic_conv2d.1} parent=0 // loop_body
    %s14 = ssub.s32 %s9, 1
    %s15 = ssub.s32 %s9, 2
    %s22 = sadd.s32 1, %s17
    %p23 = scmp.ge.s32.totalorder %s22, 1
    %s24 = scalar_select %p23, 0, %s22
    %s25 = sadd.s32 1, %s16
    %s26 = scalar_select %p23, %s25, %s16
    %p27 = scmp.ge.s32.totalorder %s26, 2
    %s28 = scalar_select %p27, 0, %s26
    %s29 = ssub.s32 %s16, %s28
    %p30 = scmp.eq.s32.totalorder %s29, 0
    %s32 = sadd.s32 %s31, 1
    %s33 = scalar_select %p30, %s31, %s32
    %p36 = pneg %p30
    %p37 = scmp.eq.s32.totalorder %s9, 1
    %p38 = por %p36, %p37
    %p39 = scmp.ne.s32.totalorder %s31, %s34
    %p40 = scmp.eq.s32.totalorder %s9, 0
    %p41 = por %p39, %p40
    %p42 = scmp.ne.s32.totalorder %s31, %s34
    %p43 = scmp.eq.s32.totalorder %s14, 1
    %p44 = por %p42, %p43
    %p45 = scmp.ne.s32.totalorder %s34, %s35
    %p46 = scmp.eq.s32.totalorder %s14, 0
    %p47 = por %p45, %p46
    %p48 = scmp.ne.s32.totalorder %s34, %s35
    %p49 = scmp.eq.s32.totalorder %s15, 1
    %p50 = por %p48, %p49
    %p52 = scmp.ne.s32.totalorder %s35, %s51
    %p53 = scmp.eq.s32.totalorder %s15, 0
    %p54 = por %p52, %p53
    %s56 = sadd.s32 %s55, 1
    %p59 = scmp.eq.s32.totalorder %s9, 1
    %p60 = scmp.ne.s32.totalorder %s55, %s57
    %p61 = scmp.eq.s32.totalorder %s9, 0
    %p62 = por %p60, %p61
    %p63 = scmp.ne.s32.totalorder %s55, %s57
    %p64 = scmp.eq.s32.totalorder %s14, 1
    %p65 = por %p63, %p64
    %p66 = scmp.ne.s32.totalorder %s57, %s58
    %p67 = scmp.eq.s32.totalorder %s14, 0
    %p68 = por %p66, %p67
    %p69 = scmp.ne.s32.totalorder %s57, %s58
    %p70 = scmp.eq.s32.totalorder %s15, 1
    %p71 = por %p69, %p70
    %p73 = scmp.ne.s32.totalorder %s58, %s72
    %p74 = scmp.eq.s32.totalorder %s15, 0
    %p75 = por %p73, %p74
    %s77 = sadd.s32 %s76, 1
    %p80 = scmp.eq.s32.totalorder %s9, 1
    %p81 = scmp.ne.s32.totalorder %s76, %s78
    %p82 = scmp.eq.s32.totalorder %s9, 0
    %p83 = por %p81, %p82
    %p84 = scmp.ne.s32.totalorder %s76, %s78
    %p85 = scmp.eq.s32.totalorder %s14, 1
    %p86 = por %p84, %p85
    %p87 = scmp.ne.s32.totalorder %s78, %s79
    %p88 = scmp.eq.s32.totalorder %s14, 0
    %p89 = por %p87, %p88
    %p90 = scmp.ne.s32.totalorder %s78, %s79
    %p91 = scmp.eq.s32.totalorder %s15, 1
    %p92 = por %p90, %p91
    %p94 = scmp.ne.s32.totalorder %s79, %s93
    %p95 = scmp.eq.s32.totalorder %s15, 0
    %p96 = por %p94, %p95
    %s97 = ssub.s32 %s16, %s28
    %s98 = ssub.s32 %s17, %s24
    %s99 = sor.u32 %s97, %s98
    %p100 = scmp.eq.s32.totalorder %s99, 0
    %s102 = sadd.s32 %s101, 1
    %s103 = scalar_select %p100, %s101, %s102
    %p106 = pneg %p100
    %p107 = scmp.eq.s32.totalorder %s9, 1
    %p108 = por %p106, %p107
    %p109 = scmp.ne.s32.totalorder %s101, %s104
    %p110 = scmp.eq.s32.totalorder %s9, 0
    %p111 = por %p109, %p110
    %p112 = scmp.ne.s32.totalorder %s101, %s104
    %p113 = scmp.eq.s32.totalorder %s14, 1
    %p114 = por %p112, %p113
    %p115 = scmp.ne.s32.totalorder %s104, %s105
    %p116 = scmp.eq.s32.totalorder %s14, 0
    %p117 = por %p115, %p116
    %p118 = scmp.ne.s32.totalorder %s104, %s105
    %p119 = scmp.eq.s32.totalorder %s15, 1
    %p120 = por %p118, %p119
    %p122 = scmp.ne.s32.totalorder %s105, %s121
    %p123 = scmp.eq.s32.totalorder %s15, 0
    %p124 = por %p122, %p123
    %p125 = scmp.le.s32.totalorder 1, %s9
    %p126 = scmp.lt.s32.totalorder %s9, 3
    %p127 = pnand %p125, %p126
    %p128 = pneg %p127
    // Predicated region
    $region9: #{basic_conv2d.1} parent=5 // pred_check
      _
    $region10: #{basic_conv2d.1} parent=5 // pred_check_branch
      %130 = sbr.rel (%p127) target = $region12
    $region11: #{basic_conv2d.1} parent=5 // pred_region
      %s131 = ssub.s32 %s9, 1
      // Predicated region
      $region13: #{basic_conv2d.1} parent=11 // pred_check
        %p132 = pneg %p68
      $region14: #{basic_conv2d.1} parent=11 // pred_check_branch
        %134 = sbr.rel (%p132) target = $region16
      $region15: #{basic_conv2d.1} parent=11 // pred_region
        _
      $region16: #{basic_conv2d.1} parent=11 // pred_fallthru
        _
      // Predicated region
      $region17: #{basic_conv2d.1} parent=11 // pred_check
        %p135 = pneg %p89
      $region18: #{basic_conv2d.1} parent=11 // pred_check_branch
        %137 = sbr.rel (%p135) target = $region20
      $region19: #{basic_conv2d.1} parent=11 // pred_region
        _
      $region20: #{basic_conv2d.1} parent=11 // pred_fallthru
        _
    $region12: #{basic_conv2d.1} parent=5 // pred_fallthru
      _
    %p138 = scmp.lt.s32.totalorder %s9, 2
    // Predicated region
    $region21: #{basic_conv2d.1} parent=5 // pred_check
      %p139 = pneg %p138
    $region22: #{basic_conv2d.1} parent=5 // pred_check_branch
      %141 = sbr.rel (%p139) target = $region24
    $region23: #{basic_conv2d.1} parent=5 // pred_region
      // Predicated region
      $region25: #{basic_conv2d.1} parent=23 // pred_check
        %p142 = pneg %p41
      $region26: #{basic_conv2d.1} parent=23 // pred_check_branch
        %144 = sbr.rel (%p142) target = $region28
      $region27: #{basic_conv2d.1} parent=23 // pred_region
        %p145 = scmp.lt.s32.totalorder %s16, 1
        %s146 = scalar_select %p145, %s16, 1
        %s147 = smul.addr %s146, 57
        %s148 = smul.addr %s147, 8
        %s149 = scalar_lea.vmem %s0, %s148
      $region28: #{basic_conv2d.1} parent=23 // pred_fallthru
        _
    $region24: #{basic_conv2d.1} parent=5 // pred_fallthru
      _
    %p150 = scmp.le.s32.totalorder 1, %s9
    %p151 = scmp.lt.s32.totalorder %s9, 3
    %p152 = pnand %p150, %p151
    %p153 = pneg %p152
    // Predicated region
    $region29: #{basic_conv2d.1} parent=5 // pred_check
      _
    $region30: #{basic_conv2d.1} parent=5 // pred_check_branch
      %155 = sbr.rel (%p152) target = $region32
    $region31: #{basic_conv2d.1} parent=5 // pred_region
      %s156 = ssub.s32 %s9, 1
      %p157 = scmp.lt.s32.totalorder %s18, 1
      %s158 = scalar_select %p157, %s18, 1
      %s159 = smul.addr %s158, 57
      %s160 = smul.addr %s159, 8
      %s161 = scalar_lea.vmem %s0, %s160
      %p162 = pneg %p47
      %p163 = pneg %p44
      %p164 = pneg %p68
      %p165 = pneg %p65
      %p166 = pneg %p89
      %p167 = pneg %p86
      %p168 = pneg %p117
      %p169 = pneg %p114
      %s170 = smul.u32 48, %s19
      %p171 = scmp.lt.s32.totalorder %s18, 1
      %s172 = scalar_select %p171, %s18, 1
      %p173 = scmp.lt.s32.totalorder %s170, 47
      %s174 = scalar_select %p173, %s170, 47
      %s175 = smul.addr %s172, 48
      %s176 = sadd.s32 %s174, %s175
      %s177 = smul.addr %s176, 8
      %s178 = scalar_lea.vmem %s3, %s177
      %p179 = scmp.lt.s32.totalorder %s18, 1
      %s180 = scalar_select %p179, %s18, 1
      %s181 = smul.addr %s180, 57
      %s182 = smul.addr %s181, 8
      %s183 = scalar_lea.vmem %s0, %s182
      %s184 = smul.u32 48, %s19
      %p185 = scmp.lt.s32.totalorder %s18, 1
      %s186 = scalar_select %p185, %s18, 1
      %p187 = scmp.lt.s32.totalorder %s184, 47
      %s188 = scalar_select %p187, %s184, 47
      %s189 = smul.addr %s186, 48
      %s190 = sadd.s32 %s188, %s189
      %s191 = smul.addr %s190, 8
      %s192 = scalar_lea.vmem %s3, %s191
      %s193 = smul.u32 48, %s19
      %s194 = smul.u32 %s19, 384
      %s195 = scalar_lea.vmem %s183, %s194
      %v196 = vld [vmem:[%s195] sm:$0xff]
      %v197 = vld [vmem:[%s195 + $0x8] sm:$0xff]
      %v198 = vld [vmem:[%s195 + $0x10] sm:$0xff]
      %v199 = vld [vmem:[%s195 + $0x18] sm:$0xff]
      %v200 = vld [vmem:[%s195 + $0x20] sm:$0xff]
      %v201 = vld [vmem:[%s195 + $0x28] sm:$0xff]
      %v202 = vld [vmem:[%s195 + $0x30] sm:$0xff]
      %v203 = vld [vmem:[%s195 + $0x38] sm:$0xff]
      %v204 = vld [vmem:[%s195 + $0x40] sm:$0xff]
      %v205 = vld [vmem:[%s195 + $0x48] sm:$0xff]
      %v206 = vld [vmem:[%s195 + $0x50] sm:$0xff]
      %v207 = vld [vmem:[%s195 + $0x58] sm:$0xff]
      %v208 = vld [vmem:[%s195 + $0x60] sm:$0xff]
      %v209 = vld [vmem:[%s195 + $0x68] sm:$0xff]
      %v210 = vld [vmem:[%s195 + $0x70] sm:$0xff]
      %v211 = vld [vmem:[%s195 + $0x78] sm:$0xff]
      %v212 = vld [vmem:[%s195 + $0x80] sm:$0xff]
      %v213 = vld [vmem:[%s195 + $0x88] sm:$0xff]
      %v214 = vld [vmem:[%s195 + $0x90] sm:$0xff]
      %v215 = vld [vmem:[%s195 + $0x98] sm:$0xff]
      %v216 = vld [vmem:[%s195 + $0xa0] sm:$0xff]
      %v217 = vld [vmem:[%s195 + $0xa8] sm:$0xff]
      %v218 = vld [vmem:[%s195 + $0xb0] sm:$0xff]
      %v219 = vld [vmem:[%s195 + $0xb8] sm:$0xff]
      %v220 = vld [vmem:[%s195 + $0xc0] sm:$0xff]
      %v221 = vld [vmem:[%s195 + $0xc8] sm:$0xff]
      %v222 = vld [vmem:[%s195 + $0xd0] sm:$0xff]
      %v223 = vld [vmem:[%s195 + $0xd8] sm:$0xff]
      %v224 = vld [vmem:[%s195 + $0xe0] sm:$0xff]
      %v225 = vld [vmem:[%s195 + $0xe8] sm:$0xff]
      %v226 = vld [vmem:[%s195 + $0xf0] sm:$0xff]
      %v227 = vld [vmem:[%s195 + $0xf8] sm:$0xff]
      %v228 = vld [vmem:[%s195 + $0x100] sm:$0xff]
      %v229 = vld [vmem:[%s195 + $0x108] sm:$0xff]
      %v230 = vld [vmem:[%s195 + $0x110] sm:$0xff]
      %v231 = vld [vmem:[%s195 + $0x118] sm:$0xff]
      %v232 = vld [vmem:[%s195 + $0x120] sm:$0xff]
      %v233 = vld [vmem:[%s195 + $0x128] sm:$0xff]
      %v234 = vld [vmem:[%s195 + $0x130] sm:$0xff]
      %v235 = vld [vmem:[%s195 + $0x138] sm:$0xff]
      %v236 = vld [vmem:[%s195 + $0x140] sm:$0xff]
      %v237 = vld [vmem:[%s195 + $0x148] sm:$0xff]
      %v238 = vld [vmem:[%s195 + $0x150] sm:$0xff]
      %v239 = vld [vmem:[%s195 + $0x158] sm:$0xff]
      %v240 = vld [vmem:[%s195 + $0x160] sm:$0xff]
      %v241 = vld [vmem:[%s195 + $0x168] sm:$0xff]
      %v242 = vld [vmem:[%s195 + $0x170] sm:$0xff]
      %v243 = vld [vmem:[%s195 + $0x178] sm:$0xff]
      %s244 = sadd.s32 %s194, 1
      %s245 = scalar_lea.vmem %s183, %s244
      %v246 = vld [vmem:[%s245] sm:$0xff]
      %v247 = vld [vmem:[%s245 + $0x8] sm:$0xff]
      %v248 = vld [vmem:[%s245 + $0x10] sm:$0xff]
      %v249 = vld [vmem:[%s245 + $0x18] sm:$0xff]
      %v250 = vld [vmem:[%s245 + $0x20] sm:$0xff]
      %v251 = vld [vmem:[%s245 + $0x28] sm:$0xff]
      %v252 = vld [vmem:[%s245 + $0x30] sm:$0xff]
      %v253 = vld [vmem:[%s245 + $0x38] sm:$0xff]
      %v254 = vld [vmem:[%s245 + $0x40] sm:$0xff]
      %v255 = vld [vmem:[%s245 + $0x48] sm:$0xff]
      %v256 = vld [vmem:[%s245 + $0x50] sm:$0xff]
      %v257 = vld [vmem:[%s245 + $0x58] sm:$0xff]
      %v258 = vld [vmem:[%s245 + $0x60] sm:$0xff]
      %v259 = vld [vmem:[%s245 + $0x68] sm:$0xff]
      %v260 = vld [vmem:[%s245 + $0x70] sm:$0xff]
      %v261 = vld [vmem:[%s245 + $0x78] sm:$0xff]
      %v262 = vld [vmem:[%s245 + $0x80] sm:$0xff]
      %v263 = vld [vmem:[%s245 + $0x88] sm:$0xff]
      %v264 = vld [vmem:[%s245 + $0x90] sm:$0xff]
      %v265 = vld [vmem:[%s245 + $0x98] sm:$0xff]
      %v266 = vld [vmem:[%s245 + $0xa0] sm:$0xff]
      %v267 = vld [vmem:[%s245 + $0xa8] sm:$0xff]
      %v268 = vld [vmem:[%s245 + $0xb0] sm:$0xff]
      %v269 = vld [vmem:[%s245 + $0xb8] sm:$0xff]
      %v270 = vld [vmem:[%s245 + $0xc0] sm:$0xff]
      %v271 = vld [vmem:[%s245 + $0xc8] sm:$0xff]
      %v272 = vld [vmem:[%s245 + $0xd0] sm:$0xff]
      %v273 = vld [vmem:[%s245 + $0xd8] sm:$0xff]
      %v274 = vld [vmem:[%s245 + $0xe0] sm:$0xff]
      %v275 = vld [vmem:[%s245 + $0xe8] sm:$0xff]
      %v276 = vld [vmem:[%s245 + $0xf0] sm:$0xff]
      %v277 = vld [vmem:[%s245 + $0xf8] sm:$0xff]
      %v278 = vld [vmem:[%s245 + $0x100] sm:$0xff]
      %v279 = vld [vmem:[%s245 + $0x108] sm:$0xff]
      %v280 = vld [vmem:[%s245 + $0x110] sm:$0xff]
      %v281 = vld [vmem:[%s245 + $0x118] sm:$0xff]
      %v282 = vld [vmem:[%s245 + $0x120] sm:$0xff]
      %v283 = vld [vmem:[%s245 + $0x128] sm:$0xff]
      %v284 = vld [vmem:[%s245 + $0x130] sm:$0xff]
      %v285 = vld [vmem:[%s245 + $0x138] sm:$0xff]
      %v286 = vld [vmem:[%s245 + $0x140] sm:$0xff]
      %v287 = vld [vmem:[%s245 + $0x148] sm:$0xff]
      %v288 = vld [vmem:[%s245 + $0x150] sm:$0xff]
      %v289 = vld [vmem:[%s245 + $0x158] sm:$0xff]
      %v290 = vld [vmem:[%s245 + $0x160] sm:$0xff]
      %v291 = vld [vmem:[%s245 + $0x168] sm:$0xff]
      %v292 = vld [vmem:[%s245 + $0x170] sm:$0xff]
      %v293 = vld [vmem:[%s245 + $0x178] sm:$0xff]
      %s294 = sadd.s32 %s194, 2
      %s295 = scalar_lea.vmem %s183, %s294
      %v296 = vld [vmem:[%s295] sm:$0xff]
      %v297 = vld [vmem:[%s295 + $0x8] sm:$0xff]
      %v298 = vld [vmem:[%s295 + $0x10] sm:$0xff]
      %v299 = vld [vmem:[%s295 + $0x18] sm:$0xff]
      %v300 = vld [vmem:[%s295 + $0x20] sm:$0xff]
      %v301 = vld [vmem:[%s295 + $0x28] sm:$0xff]
      %v302 = vld [vmem:[%s295 + $0x30] sm:$0xff]
      %v303 = vld [vmem:[%s295 + $0x38] sm:$0xff]
      %v304 = vld [vmem:[%s295 + $0x40] sm:$0xff]
      %v305 = vld [vmem:[%s295 + $0x48] sm:$0xff]
      %v306 = vld [vmem:[%s295 + $0x50] sm:$0xff]
      %v307 = vld [vmem:[%s295 + $0x58] sm:$0xff]
      %v308 = vld [vmem:[%s295 + $0x60] sm:$0xff]
      %v309 = vld [vmem:[%s295 + $0x68] sm:$0xff]
      %v310 = vld [vmem:[%s295 + $0x70] sm:$0xff]
      %v311 = vld [vmem:[%s295 + $0x78] sm:$0xff]
      %v312 = vld [vmem:[%s295 + $0x80] sm:$0xff]
      %v313 = vld [vmem:[%s295 + $0x88] sm:$0xff]
      %v314 = vld [vmem:[%s295 + $0x90] sm:$0xff]
      %v315 = vld [vmem:[%s295 + $0x98] sm:$0xff]
      %v316 = vld [vmem:[%s295 + $0xa0] sm:$0xff]
      %v317 = vld [vmem:[%s295 + $0xa8] sm:$0xff]
      %v318 = vld [vmem:[%s295 + $0xb0] sm:$0xff]
      %v319 = vld [vmem:[%s295 + $0xb8] sm:$0xff]
      %v320 = vld [vmem:[%s295 + $0xc0] sm:$0xff]
      %v321 = vld [vmem:[%s295 + $0xc8] sm:$0xff]
      %v322 = vld [vmem:[%s295 + $0xd0] sm:$0xff]
      %v323 = vld [vmem:[%s295 + $0xd8] sm:$0xff]
      %v324 = vld [vmem:[%s295 + $0xe0] sm:$0xff]
      %v325 = vld [vmem:[%s295 + $0xe8] sm:$0xff]
      %v326 = vld [vmem:[%s295 + $0xf0] sm:$0xff]
      %v327 = vld [vmem:[%s295 + $0xf8] sm:$0xff]
      %v328 = vld [vmem:[%s295 + $0x100] sm:$0xff]
      %v329 = vld [vmem:[%s295 + $0x108] sm:$0xff]
      %v330 = vld [vmem:[%s295 + $0x110] sm:$0xff]
      %v331 = vld [vmem:[%s295 + $0x118] sm:$0xff]
      %v332 = vld [vmem:[%s295 + $0x120] sm:$0xff]
      %v333 = vld [vmem:[%s295 + $0x128] sm:$0xff]
      %v334 = vld [vmem:[%s295 + $0x130] sm:$0xff]
      %v335 = vld [vmem:[%s295 + $0x138] sm:$0xff]
      %v336 = vld [vmem:[%s295 + $0x140] sm:$0xff]
      %v337 = vld [vmem:[%s295 + $0x148] sm:$0xff]
      %v338 = vld [vmem:[%s295 + $0x150] sm:$0xff]
      %v339 = vld [vmem:[%s295 + $0x158] sm:$0xff]
      %v340 = vld [vmem:[%s295 + $0x160] sm:$0xff]
      %v341 = vld [vmem:[%s295 + $0x168] sm:$0xff]
      %v342 = vld [vmem:[%s295 + $0x170] sm:$0xff]
      %v343 = vld [vmem:[%s295 + $0x178] sm:$0xff]
      %s344 = sadd.s32 %s194, 24
      %s345 = scalar_lea.vmem %s183, %s344
      %v346 = vld [vmem:[%s345] sm:$0xff]
      %v347 = vld [vmem:[%s345 + $0x8] sm:$0xff]
      %v348 = vld [vmem:[%s345 + $0x10] sm:$0xff]
      %v349 = vld [vmem:[%s345 + $0x18] sm:$0xff]
      %v350 = vld [vmem:[%s345 + $0x20] sm:$0xff]
      %v351 = vld [vmem:[%s345 + $0x28] sm:$0xff]
      %v352 = vld [vmem:[%s345 + $0x30] sm:$0xff]
      %v353 = vld [vmem:[%s345 + $0x38] sm:$0xff]
      %v354 = vld [vmem:[%s345 + $0x40] sm:$0xff]
      %v355 = vld [vmem:[%s345 + $0x48] sm:$0xff]
      %v356 = vld [vmem:[%s345 + $0x50] sm:$0xff]
      %v357 = vld [vmem:[%s345 + $0x58] sm:$0xff]
      %v358 = vld [vmem:[%s345 + $0x60] sm:$0xff]
      %v359 = vld [vmem:[%s345 + $0x68] sm:$0xff]
      %v360 = vld [vmem:[%s345 + $0x70] sm:$0xff]
      %v361 = vld [vmem:[%s345 + $0x78] sm:$0xff]
      %v362 = vld [vmem:[%s345 + $0x80] sm:$0xff]
      %v363 = vld [vmem:[%s345 + $0x88] sm:$0xff]
      %v364 = vld [vmem:[%s345 + $0x90] sm:$0xff]
      %v365 = vld [vmem:[%s345 + $0x98] sm:$0xff]
      %v366 = vld [vmem:[%s345 + $0xa0] sm:$0xff]
      %v367 = vld [vmem:[%s345 + $0xa8] sm:$0xff]
      %v368 = vld [vmem:[%s345 + $0xb0] sm:$0xff]
      %v369 = vld [vmem:[%s345 + $0xb8] sm:$0xff]
      %v370 = vld [vmem:[%s345 + $0xc0] sm:$0xff]
      %v371 = vld [vmem:[%s345 + $0xc8] sm:$0xff]
      %v372 = vld [vmem:[%s345 + $0xd0] sm:$0xff]
      %v373 = vld [vmem:[%s345 + $0xd8] sm:$0xff]
      %v374 = vld [vmem:[%s345 + $0xe0] sm:$0xff]
      %v375 = vld [vmem:[%s345 + $0xe8] sm:$0xff]
      %v376 = vld [vmem:[%s345 + $0xf0] sm:$0xff]
      %v377 = vld [vmem:[%s345 + $0xf8] sm:$0xff]
      %v378 = vld [vmem:[%s345 + $0x100] sm:$0xff]
      %v379 = vld [vmem:[%s345 + $0x108] sm:$0xff]
      %v380 = vld [vmem:[%s345 + $0x110] sm:$0xff]
      %v381 = vld [vmem:[%s345 + $0x118] sm:$0xff]
      %v382 = vld [vmem:[%s345 + $0x120] sm:$0xff]
      %v383 = vld [vmem:[%s345 + $0x128] sm:$0xff]
      %v384 = vld [vmem:[%s345 + $0x130] sm:$0xff]
      %v385 = vld [vmem:[%s345 + $0x138] sm:$0xff]
      %v386 = vld [vmem:[%s345 + $0x140] sm:$0xff]
      %v387 = vld [vmem:[%s345 + $0x148] sm:$0xff]
      %v388 = vld [vmem:[%s345 + $0x150] sm:$0xff]
      %v389 = vld [vmem:[%s345 + $0x158] sm:$0xff]
      %v390 = vld [vmem:[%s345 + $0x160] sm:$0xff]
      %v391 = vld [vmem:[%s345 + $0x168] sm:$0xff]
      %v392 = vld [vmem:[%s345 + $0x170] sm:$0xff]
      %v393 = vld [vmem:[%s345 + $0x178] sm:$0xff]
      %s394 = sadd.s32 %s194, 25
      %s395 = scalar_lea.vmem %s183, %s394
      %v396 = vld [vmem:[%s395] sm:$0xff]
      %v397 = vld [vmem:[%s395 + $0x8] sm:$0xff]
      %v398 = vld [vmem:[%s395 + $0x10] sm:$0xff]
      %v399 = vld [vmem:[%s395 + $0x18] sm:$0xff]
      %v400 = vld [vmem:[%s395 + $0x20] sm:$0xff]
      %v401 = vld [vmem:[%s395 + $0x28] sm:$0xff]
      %v402 = vld [vmem:[%s395 + $0x30] sm:$0xff]
      %v403 = vld [vmem:[%s395 + $0x38] sm:$0xff]
      %v404 = vld [vmem:[%s395 + $0x40] sm:$0xff]
      %v405 = vld [vmem:[%s395 + $0x48] sm:$0xff]
      %v406 = vld [vmem:[%s395 + $0x50] sm:$0xff]
      %v407 = vld [vmem:[%s395 + $0x58] sm:$0xff]
      %v408 = vld [vmem:[%s395 + $0x60] sm:$0xff]
      %v409 = vld [vmem:[%s395 + $0x68] sm:$0xff]
      %v410 = vld [vmem:[%s395 + $0x70] sm:$0xff]
      %v411 = vld [vmem:[%s395 + $0x78] sm:$0xff]
      %v412 = vld [vmem:[%s395 + $0x80] sm:$0xff]
      %v413 = vld [vmem:[%s395 + $0x88] sm:$0xff]
      %v414 = vld [vmem:[%s395 + $0x90] sm:$0xff]
      %v415 = vld [vmem:[%s395 + $0x98] sm:$0xff]
      %v416 = vld [vmem:[%s395 + $0xa0] sm:$0xff]
      %v417 = vld [vmem:[%s395 + $0xa8] sm:$0xff]
      %v418 = vld [vmem:[%s395 + $0xb0] sm:$0xff]
      %v419 = vld [vmem:[%s395 + $0xb8] sm:$0xff]
      %v420 = vld [vmem:[%s395 + $0xc0] sm:$0xff]
      %v421 = vld [vmem:[%s395 + $0xc8] sm:$0xff]
      %v422 = vld [vmem:[%s395 + $0xd0] sm:$0xff]
      %v423 = vld [vmem:[%s395 + $0xd8] sm:$0xff]
      %v424 = vld [vmem:[%s395 + $0xe0] sm:$0xff]
      %v425 = vld [vmem:[%s395 + $0xe8] sm:$0xff]
      %v426 = vld [vmem:[%s395 + $0xf0] sm:$0xff]
      %v427 = vld [vmem:[%s395 + $0xf8] sm:$0xff]
      %v428 = vld [vmem:[%s395 + $0x100] sm:$0xff]
      %v429 = vld [vmem:[%s395 + $0x108] sm:$0xff]
      %v430 = vld [vmem:[%s395 + $0x110] sm:$0xff]
      %v431 = vld [vmem:[%s395 + $0x118] sm:$0xff]
      %v432 = vld [vmem:[%s395 + $0x120] sm:$0xff]
      %v433 = vld [vmem:[%s395 + $0x128] sm:$0xff]
      %v434 = vld [vmem:[%s395 + $0x130] sm:$0xff]
      %v435 = vld [vmem:[%s395 + $0x138] sm:$0xff]
      %v436 = vld [vmem:[%s395 + $0x140] sm:$0xff]
      %v437 = vld [vmem:[%s395 + $0x148] sm:$0xff]
      %v438 = vld [vmem:[%s395 + $0x150] sm:$0xff]
      %v439 = vld [vmem:[%s395 + $0x158] sm:$0xff]
      %v440 = vld [vmem:[%s395 + $0x160] sm:$0xff]
      %v441 = vld [vmem:[%s395 + $0x168] sm:$0xff]
      %v442 = vld [vmem:[%s395 + $0x170] sm:$0xff]
      %v443 = vld [vmem:[%s395 + $0x178] sm:$0xff]
      %s444 = sadd.s32 %s194, 26
      %s445 = scalar_lea.vmem %s183, %s444
      %v446 = vld [vmem:[%s445] sm:$0xff]
      %v447 = vld [vmem:[%s445 + $0x8] sm:$0xff]
      %v448 = vld [vmem:[%s445 + $0x10] sm:$0xff]
      %v449 = vld [vmem:[%s445 + $0x18] sm:$0xff]
      %v450 = vld [vmem:[%s445 + $0x20] sm:$0xff]
      %v451 = vld [vmem:[%s445 + $0x28] sm:$0xff]
      %v452 = vld [vmem:[%s445 + $0x30] sm:$0xff]
      %v453 = vld [vmem:[%s445 + $0x38] sm:$0xff]
      %v454 = vld [vmem:[%s445 + $0x40] sm:$0xff]
      %v455 = vld [vmem:[%s445 + $0x48] sm:$0xff]
      %v456 = vld [vmem:[%s445 + $0x50] sm:$0xff]
      %v457 = vld [vmem:[%s445 + $0x58] sm:$0xff]
      %v458 = vld [vmem:[%s445 + $0x60] sm:$0xff]
      %v459 = vld [vmem:[%s445 + $0x68] sm:$0xff]
      %v460 = vld [vmem:[%s445 + $0x70] sm:$0xff]
      %v461 = vld [vmem:[%s445 + $0x78] sm:$0xff]
      %v462 = vld [vmem:[%s445 + $0x80] sm:$0xff]
      %v463 = vld [vmem:[%s445 + $0x88] sm:$0xff]
      %v464 = vld [vmem:[%s445 + $0x90] sm:$0xff]
      %v465 = vld [vmem:[%s445 + $0x98] sm:$0xff]
      %v466 = vld [vmem:[%s445 + $0xa0] sm:$0xff]
      %v467 = vld [vmem:[%s445 + $0xa8] sm:$0xff]
      %v468 = vld [vmem:[%s445 + $0xb0] sm:$0xff]
      %v469 = vld [vmem:[%s445 + $0xb8] sm:$0xff]
      %v470 = vld [vmem:[%s445 + $0xc0] sm:$0xff]
      %v471 = vld [vmem:[%s445 + $0xc8] sm:$0xff]
      %v472 = vld [vmem:[%s445 + $0xd0] sm:$0xff]
      %v473 = vld [vmem:[%s445 + $0xd8] sm:$0xff]
      %v474 = vld [vmem:[%s445 + $0xe0] sm:$0xff]
      %v475 = vld [vmem:[%s445 + $0xe8] sm:$0xff]
      %v476 = vld [vmem:[%s445 + $0xf0] sm:$0xff]
      %v477 = vld [vmem:[%s445 + $0xf8] sm:$0xff]
      %v478 = vld [vmem:[%s445 + $0x100] sm:$0xff]
      %v479 = vld [vmem:[%s445 + $0x108] sm:$0xff]
      %v480 = vld [vmem:[%s445 + $0x110] sm:$0xff]
      %v481 = vld [vmem:[%s445 + $0x118] sm:$0xff]
      %v482 = vld [vmem:[%s445 + $0x120] sm:$0xff]
      %v483 = vld [vmem:[%s445 + $0x128] sm:$0xff]
      %v484 = vld [vmem:[%s445 + $0x130] sm:$0xff]
      %v485 = vld [vmem:[%s445 + $0x138] sm:$0xff]
      %v486 = vld [vmem:[%s445 + $0x140] sm:$0xff]
      %v487 = vld [vmem:[%s445 + $0x148] sm:$0xff]
      %v488 = vld [vmem:[%s445 + $0x150] sm:$0xff]
      %v489 = vld [vmem:[%s445 + $0x158] sm:$0xff]
      %v490 = vld [vmem:[%s445 + $0x160] sm:$0xff]
      %v491 = vld [vmem:[%s445 + $0x168] sm:$0xff]
      %v492 = vld [vmem:[%s445 + $0x170] sm:$0xff]
      %v493 = vld [vmem:[%s445 + $0x178] sm:$0xff]
      %s494 = sadd.s32 %s194, 48
      %s495 = scalar_lea.vmem %s183, %s494
      %v496 = vld [vmem:[%s495] sm:$0xff]
      %v497 = vld [vmem:[%s495 + $0x8] sm:$0xff]
      %v498 = vld [vmem:[%s495 + $0x10] sm:$0xff]
      %v499 = vld [vmem:[%s495 + $0x18] sm:$0xff]
      %v500 = vld [vmem:[%s495 + $0x20] sm:$0xff]
      %v501 = vld [vmem:[%s495 + $0x28] sm:$0xff]
      %v502 = vld [vmem:[%s495 + $0x30] sm:$0xff]
      %v503 = vld [vmem:[%s495 + $0x38] sm:$0xff]
      %v504 = vld [vmem:[%s495 + $0x40] sm:$0xff]
      %v505 = vld [vmem:[%s495 + $0x48] sm:$0xff]
      %v506 = vld [vmem:[%s495 + $0x50] sm:$0xff]
      %v507 = vld [vmem:[%s495 + $0x58] sm:$0xff]
      %v508 = vld [vmem:[%s495 + $0x60] sm:$0xff]
      %v509 = vld [vmem:[%s495 + $0x68] sm:$0xff]
      %v510 = vld [vmem:[%s495 + $0x70] sm:$0xff]
      %v511 = vld [vmem:[%s495 + $0x78] sm:$0xff]
      %v512 = vld [vmem:[%s495 + $0x80] sm:$0xff]
      %v513 = vld [vmem:[%s495 + $0x88] sm:$0xff]
      %v514 = vld [vmem:[%s495 + $0x90] sm:$0xff]
      %v515 = vld [vmem:[%s495 + $0x98] sm:$0xff]
      %v516 = vld [vmem:[%s495 + $0xa0] sm:$0xff]
      %v517 = vld [vmem:[%s495 + $0xa8] sm:$0xff]
      %v518 = vld [vmem:[%s495 + $0xb0] sm:$0xff]
      %v519 = vld [vmem:[%s495 + $0xb8] sm:$0xff]
      %v520 = vld [vmem:[%s495 + $0xc0] sm:$0xff]
      %v521 = vld [vmem:[%s495 + $0xc8] sm:$0xff]
      %v522 = vld [vmem:[%s495 + $0xd0] sm:$0xff]
      %v523 = vld [vmem:[%s495 + $0xd8] sm:$0xff]
      %v524 = vld [vmem:[%s495 + $0xe0] sm:$0xff]
      %v525 = vld [vmem:[%s495 + $0xe8] sm:$0xff]
      %v526 = vld [vmem:[%s495 + $0xf0] sm:$0xff]
      %v527 = vld [vmem:[%s495 + $0xf8] sm:$0xff]
      %v528 = vld [vmem:[%s495 + $0x100] sm:$0xff]
      %v529 = vld [vmem:[%s495 + $0x108] sm:$0xff]
      %v530 = vld [vmem:[%s495 + $0x110] sm:$0xff]
      %v531 = vld [vmem:[%s495 + $0x118] sm:$0xff]
      %v532 = vld [vmem:[%s495 + $0x120] sm:$0xff]
      %v533 = vld [vmem:[%s495 + $0x128] sm:$0xff]
      %v534 = vld [vmem:[%s495 + $0x130] sm:$0xff]
      %v535 = vld [vmem:[%s495 + $0x138] sm:$0xff]
      %v536 = vld [vmem:[%s495 + $0x140] sm:$0xff]
      %v537 = vld [vmem:[%s495 + $0x148] sm:$0xff]
      %v538 = vld [vmem:[%s495 + $0x150] sm:$0xff]
      %v539 = vld [vmem:[%s495 + $0x158] sm:$0xff]
      %v540 = vld [vmem:[%s495 + $0x160] sm:$0xff]
      %v541 = vld [vmem:[%s495 + $0x168] sm:$0xff]
      %v542 = vld [vmem:[%s495 + $0x170] sm:$0xff]
      %v543 = vld [vmem:[%s495 + $0x178] sm:$0xff]
      %s544 = sadd.s32 %s194, 49
      %s545 = scalar_lea.vmem %s183, %s544
      %v546 = vld [vmem:[%s545] sm:$0xff]
      %v547 = vld [vmem:[%s545 + $0x8] sm:$0xff]
      %v548 = vld [vmem:[%s545 + $0x10] sm:$0xff]
      %v549 = vld [vmem:[%s545 + $0x18] sm:$0xff]
      %v550 = vld [vmem:[%s545 + $0x20] sm:$0xff]
      %v551 = vld [vmem:[%s545 + $0x28] sm:$0xff]
      %v552 = vld [vmem:[%s545 + $0x30] sm:$0xff]
      %v553 = vld [vmem:[%s545 + $0x38] sm:$0xff]
      %v554 = vld [vmem:[%s545 + $0x40] sm:$0xff]
      %v555 = vld [vmem:[%s545 + $0x48] sm:$0xff]
      %v556 = vld [vmem:[%s545 + $0x50] sm:$0xff]
      %v557 = vld [vmem:[%s545 + $0x58] sm:$0xff]
      %v558 = vld [vmem:[%s545 + $0x60] sm:$0xff]
      %v559 = vld [vmem:[%s545 + $0x68] sm:$0xff]
      %v560 = vld [vmem:[%s545 + $0x70] sm:$0xff]
      %v561 = vld [vmem:[%s545 + $0x78] sm:$0xff]
      %v562 = vld [vmem:[%s545 + $0x80] sm:$0xff]
      %v563 = vld [vmem:[%s545 + $0x88] sm:$0xff]
      %v564 = vld [vmem:[%s545 + $0x90] sm:$0xff]
      %v565 = vld [vmem:[%s545 + $0x98] sm:$0xff]
      %v566 = vld [vmem:[%s545 + $0xa0] sm:$0xff]
      %v567 = vld [vmem:[%s545 + $0xa8] sm:$0xff]
      %v568 = vld [vmem:[%s545 + $0xb0] sm:$0xff]
      %v569 = vld [vmem:[%s545 + $0xb8] sm:$0xff]
      %v570 = vld [vmem:[%s545 + $0xc0] sm:$0xff]
      %v571 = vld [vmem:[%s545 + $0xc8] sm:$0xff]
      %v572 = vld [vmem:[%s545 + $0xd0] sm:$0xff]
      %v573 = vld [vmem:[%s545 + $0xd8] sm:$0xff]
      %v574 = vld [vmem:[%s545 + $0xe0] sm:$0xff]
      %v575 = vld [vmem:[%s545 + $0xe8] sm:$0xff]
      %v576 = vld [vmem:[%s545 + $0xf0] sm:$0xff]
      %v577 = vld [vmem:[%s545 + $0xf8] sm:$0xff]
      %v578 = vld [vmem:[%s545 + $0x100] sm:$0xff]
      %v579 = vld [vmem:[%s545 + $0x108] sm:$0xff]
      %v580 = vld [vmem:[%s545 + $0x110] sm:$0xff]
      %v581 = vld [vmem:[%s545 + $0x118] sm:$0xff]
      %v582 = vld [vmem:[%s545 + $0x120] sm:$0xff]
      %v583 = vld [vmem:[%s545 + $0x128] sm:$0xff]
      %v584 = vld [vmem:[%s545 + $0x130] sm:$0xff]
      %v585 = vld [vmem:[%s545 + $0x138] sm:$0xff]
      %v586 = vld [vmem:[%s545 + $0x140] sm:$0xff]
      %v587 = vld [vmem:[%s545 + $0x148] sm:$0xff]
      %v588 = vld [vmem:[%s545 + $0x150] sm:$0xff]
      %v589 = vld [vmem:[%s545 + $0x158] sm:$0xff]
      %v590 = vld [vmem:[%s545 + $0x160] sm:$0xff]
      %v591 = vld [vmem:[%s545 + $0x168] sm:$0xff]
      %v592 = vld [vmem:[%s545 + $0x170] sm:$0xff]
      %v593 = vld [vmem:[%s545 + $0x178] sm:$0xff]
      %s594 = sadd.s32 %s194, 50
      %s595 = scalar_lea.vmem %s183, %s594
      %v596 = vld [vmem:[%s595] sm:$0xff]
      %v597 = vld [vmem:[%s595 + $0x8] sm:$0xff]
      %v598 = vld [vmem:[%s595 + $0x10] sm:$0xff]
      %v599 = vld [vmem:[%s595 + $0x18] sm:$0xff]
      %v600 = vld [vmem:[%s595 + $0x20] sm:$0xff]
      %v601 = vld [vmem:[%s595 + $0x28] sm:$0xff]
      %v602 = vld [vmem:[%s595 + $0x30] sm:$0xff]
      %v603 = vld [vmem:[%s595 + $0x38] sm:$0xff]
      %v604 = vld [vmem:[%s595 + $0x40] sm:$0xff]
      %v605 = vld [vmem:[%s595 + $0x48] sm:$0xff]
      %v606 = vld [vmem:[%s595 + $0x50] sm:$0xff]
      %v607 = vld [vmem:[%s595 + $0x58] sm:$0xff]
      %v608 = vld [vmem:[%s595 + $0x60] sm:$0xff]
      %v609 = vld [vmem:[%s595 + $0x68] sm:$0xff]
      %v610 = vld [vmem:[%s595 + $0x70] sm:$0xff]
      %v611 = vld [vmem:[%s595 + $0x78] sm:$0xff]
      %v612 = vld [vmem:[%s595 + $0x80] sm:$0xff]
      %v613 = vld [vmem:[%s595 + $0x88] sm:$0xff]
      %v614 = vld [vmem:[%s595 + $0x90] sm:$0xff]
      %v615 = vld [vmem:[%s595 + $0x98] sm:$0xff]
      %v616 = vld [vmem:[%s595 + $0xa0] sm:$0xff]
      %v617 = vld [vmem:[%s595 + $0xa8] sm:$0xff]
      %v618 = vld [vmem:[%s595 + $0xb0] sm:$0xff]
      %v619 = vld [vmem:[%s595 + $0xb8] sm:$0xff]
      %v620 = vld [vmem:[%s595 + $0xc0] sm:$0xff]
      %v621 = vld [vmem:[%s595 + $0xc8] sm:$0xff]
      %v622 = vld [vmem:[%s595 + $0xd0] sm:$0xff]
      %v623 = vld [vmem:[%s595 + $0xd8] sm:$0xff]
      %v624 = vld [vmem:[%s595 + $0xe0] sm:$0xff]
      %v625 = vld [vmem:[%s595 + $0xe8] sm:$0xff]
      %v626 = vld [vmem:[%s595 + $0xf0] sm:$0xff]
      %v627 = vld [vmem:[%s595 + $0xf8] sm:$0xff]
      %v628 = vld [vmem:[%s595 + $0x100] sm:$0xff]
      %v629 = vld [vmem:[%s595 + $0x108] sm:$0xff]
      %v630 = vld [vmem:[%s595 + $0x110] sm:$0xff]
      %v631 = vld [vmem:[%s595 + $0x118] sm:$0xff]
      %v632 = vld [vmem:[%s595 + $0x120] sm:$0xff]
      %v633 = vld [vmem:[%s595 + $0x128] sm:$0xff]
      %v634 = vld [vmem:[%s595 + $0x130] sm:$0xff]
      %v635 = vld [vmem:[%s595 + $0x138] sm:$0xff]
      %v636 = vld [vmem:[%s595 + $0x140] sm:$0xff]
      %v637 = vld [vmem:[%s595 + $0x148] sm:$0xff]
      %v638 = vld [vmem:[%s595 + $0x150] sm:$0xff]
      %v639 = vld [vmem:[%s595 + $0x158] sm:$0xff]
      %v640 = vld [vmem:[%s595 + $0x160] sm:$0xff]
      %v641 = vld [vmem:[%s595 + $0x168] sm:$0xff]
      %v642 = vld [vmem:[%s595 + $0x170] sm:$0xff]
      %v643 = vld [vmem:[%s595 + $0x178] sm:$0xff]
      %692 = vrot.lane.b32.xlu0 %v246, 8
      %v693 = vpop.permute.xlu0 %692
      %694 = vrot.lane.b32.xlu0 %v247, 8
      %v695 = vpop.permute.xlu0 %694
      %696 = vrot.lane.b32.xlu0 %v248, 8
      %v697 = vpop.permute.xlu0 %696
      %698 = vrot.lane.b32.xlu0 %v249, 8
      %v699 = vpop.permute.xlu0 %698
      %700 = vrot.lane.b32.xlu0 %v250, 8
      %v701 = vpop.permute.xlu0 %700
      %702 = vrot.lane.b32.xlu0 %v251, 8
      %v703 = vpop.permute.xlu0 %702
      %704 = vrot.lane.b32.xlu0 %v252, 8
      %v705 = vpop.permute.xlu0 %704
      %706 = vrot.lane.b32.xlu0 %v253, 8
      %v707 = vpop.permute.xlu0 %706
      %708 = vrot.lane.b32.xlu0 %v254, 8
      %v709 = vpop.permute.xlu0 %708
      %710 = vrot.lane.b32.xlu0 %v255, 8
      %v711 = vpop.permute.xlu0 %710
      %712 = vrot.lane.b32.xlu0 %v256, 8
      %v713 = vpop.permute.xlu0 %712
      %714 = vrot.lane.b32.xlu0 %v257, 8
      %v715 = vpop.permute.xlu0 %714
      %716 = vrot.lane.b32.xlu0 %v258, 8
      %v717 = vpop.permute.xlu0 %716
      %718 = vrot.lane.b32.xlu0 %v259, 8
      %v719 = vpop.permute.xlu0 %718
      %720 = vrot.lane.b32.xlu0 %v260, 8
      %v721 = vpop.permute.xlu0 %720
      %722 = vrot.lane.b32.xlu0 %v261, 8
      %v723 = vpop.permute.xlu0 %722
      %724 = vrot.lane.b32.xlu0 %v262, 8
      %v725 = vpop.permute.xlu0 %724
      %726 = vrot.lane.b32.xlu0 %v263, 8
      %v727 = vpop.permute.xlu0 %726
      %728 = vrot.lane.b32.xlu0 %v264, 8
      %v729 = vpop.permute.xlu0 %728
      %730 = vrot.lane.b32.xlu0 %v265, 8
      %v731 = vpop.permute.xlu0 %730
      %732 = vrot.lane.b32.xlu0 %v266, 8
      %v733 = vpop.permute.xlu0 %732
      %734 = vrot.lane.b32.xlu0 %v267, 8
      %v735 = vpop.permute.xlu0 %734
      %736 = vrot.lane.b32.xlu0 %v268, 8
      %v737 = vpop.permute.xlu0 %736
      %738 = vrot.lane.b32.xlu0 %v269, 8
      %v739 = vpop.permute.xlu0 %738
      %740 = vrot.lane.b32.xlu0 %v270, 8
      %v741 = vpop.permute.xlu0 %740
      %742 = vrot.lane.b32.xlu0 %v271, 8
      %v743 = vpop.permute.xlu0 %742
      %744 = vrot.lane.b32.xlu0 %v272, 8
      %v745 = vpop.permute.xlu0 %744
      %746 = vrot.lane.b32.xlu0 %v273, 8
      %v747 = vpop.permute.xlu0 %746
      %748 = vrot.lane.b32.xlu0 %v274, 8
      %v749 = vpop.permute.xlu0 %748
      %750 = vrot.lane.b32.xlu0 %v275, 8
      %v751 = vpop.permute.xlu0 %750
      %752 = vrot.lane.b32.xlu0 %v276, 8
      %v753 = vpop.permute.xlu0 %752
      %754 = vrot.lane.b32.xlu0 %v277, 8
      %v755 = vpop.permute.xlu0 %754
      %756 = vrot.lane.b32.xlu0 %v278, 8
      %v757 = vpop.permute.xlu0 %756
      %758 = vrot.lane.b32.xlu0 %v279, 8
      %v759 = vpop.permute.xlu0 %758
      %760 = vrot.lane.b32.xlu0 %v280, 8
      %v761 = vpop.permute.xlu0 %760
      %762 = vrot.lane.b32.xlu0 %v281, 8
      %v763 = vpop.permute.xlu0 %762
      %764 = vrot.lane.b32.xlu0 %v282, 8
      %v765 = vpop.permute.xlu0 %764
      %766 = vrot.lane.b32.xlu0 %v283, 8
      %v767 = vpop.permute.xlu0 %766
      %768 = vrot.lane.b32.xlu0 %v284, 8
      %v769 = vpop.permute.xlu0 %768
      %770 = vrot.lane.b32.xlu0 %v285, 8
      %v771 = vpop.permute.xlu0 %770
      %772 = vrot.lane.b32.xlu0 %v286, 8
      %v773 = vpop.permute.xlu0 %772
      %774 = vrot.lane.b32.xlu0 %v287, 8
      %v775 = vpop.permute.xlu0 %774
      %776 = vrot.lane.b32.xlu0 %v288, 8
      %v777 = vpop.permute.xlu0 %776
      %778 = vrot.lane.b32.xlu0 %v289, 8
      %v779 = vpop.permute.xlu0 %778
      %780 = vrot.lane.b32.xlu0 %v290, 8
      %v781 = vpop.permute.xlu0 %780
      %782 = vrot.lane.b32.xlu0 %v291, 8
      %v783 = vpop.permute.xlu0 %782
      %784 = vrot.lane.b32.xlu0 %v292, 8
      %v785 = vpop.permute.xlu0 %784
      %786 = vrot.lane.b32.xlu0 %v293, 8
      %v787 = vpop.permute.xlu0 %786
      %884 = vrot.lane.b32.xlu0 %v296, 16
      %v885 = vpop.permute.xlu0 %884
      %886 = vrot.lane.b32.xlu0 %v297, 16
      %v887 = vpop.permute.xlu0 %886
      %888 = vrot.lane.b32.xlu0 %v298, 16
      %v889 = vpop.permute.xlu0 %888
      %890 = vrot.lane.b32.xlu0 %v299, 16
      %v891 = vpop.permute.xlu0 %890
      %892 = vrot.lane.b32.xlu0 %v300, 16
      %v893 = vpop.permute.xlu0 %892
      %894 = vrot.lane.b32.xlu0 %v301, 16
      %v895 = vpop.permute.xlu0 %894
      %896 = vrot.lane.b32.xlu0 %v302, 16
      %v897 = vpop.permute.xlu0 %896
      %898 = vrot.lane.b32.xlu0 %v303, 16
      %v899 = vpop.permute.xlu0 %898
      %900 = vrot.lane.b32.xlu0 %v304, 16
      %v901 = vpop.permute.xlu0 %900
      %902 = vrot.lane.b32.xlu0 %v305, 16
      %v903 = vpop.permute.xlu0 %902
      %904 = vrot.lane.b32.xlu0 %v306, 16
      %v905 = vpop.permute.xlu0 %904
      %906 = vrot.lane.b32.xlu0 %v307, 16
      %v907 = vpop.permute.xlu0 %906
      %908 = vrot.lane.b32.xlu0 %v308, 16
      %v909 = vpop.permute.xlu0 %908
      %910 = vrot.lane.b32.xlu0 %v309, 16
      %v911 = vpop.permute.xlu0 %910
      %912 = vrot.lane.b32.xlu0 %v310, 16
      %v913 = vpop.permute.xlu0 %912
      %914 = vrot.lane.b32.xlu0 %v311, 16
      %v915 = vpop.permute.xlu0 %914
      %916 = vrot.lane.b32.xlu0 %v312, 16
      %v917 = vpop.permute.xlu0 %916
      %918 = vrot.lane.b32.xlu0 %v313, 16
      %v919 = vpop.permute.xlu0 %918
      %920 = vrot.lane.b32.xlu0 %v314, 16
      %v921 = vpop.permute.xlu0 %920
      %922 = vrot.lane.b32.xlu0 %v315, 16
      %v923 = vpop.permute.xlu0 %922
      %924 = vrot.lane.b32.xlu0 %v316, 16
      %v925 = vpop.permute.xlu0 %924
      %926 = vrot.lane.b32.xlu0 %v317, 16
      %v927 = vpop.permute.xlu0 %926
      %928 = vrot.lane.b32.xlu0 %v318, 16
      %v929 = vpop.permute.xlu0 %928
      %930 = vrot.lane.b32.xlu0 %v319, 16
      %v931 = vpop.permute.xlu0 %930
      %932 = vrot.lane.b32.xlu0 %v320, 16
      %v933 = vpop.permute.xlu0 %932
      %934 = vrot.lane.b32.xlu0 %v321, 16
      %v935 = vpop.permute.xlu0 %934
      %936 = vrot.lane.b32.xlu0 %v322, 16
      %v937 = vpop.permute.xlu0 %936
      %938 = vrot.lane.b32.xlu0 %v323, 16
      %v939 = vpop.permute.xlu0 %938
      %940 = vrot.lane.b32.xlu0 %v324, 16
      %v941 = vpop.permute.xlu0 %940
      %942 = vrot.lane.b32.xlu0 %v325, 16
      %v943 = vpop.permute.xlu0 %942
      %944 = vrot.lane.b32.xlu0 %v326, 16
      %v945 = vpop.permute.xlu0 %944
      %946 = vrot.lane.b32.xlu0 %v327, 16
      %v947 = vpop.permute.xlu0 %946
      %948 = vrot.lane.b32.xlu0 %v328, 16
      %v949 = vpop.permute.xlu0 %948
      %950 = vrot.lane.b32.xlu0 %v329, 16
      %v951 = vpop.permute.xlu0 %950
      %952 = vrot.lane.b32.xlu0 %v330, 16
      %v953 = vpop.permute.xlu0 %952
      %954 = vrot.lane.b32.xlu0 %v331, 16
      %v955 = vpop.permute.xlu0 %954
      %956 = vrot.lane.b32.xlu0 %v332, 16
      %v957 = vpop.permute.xlu0 %956
      %958 = vrot.lane.b32.xlu0 %v333, 16
      %v959 = vpop.permute.xlu0 %958
      %960 = vrot.lane.b32.xlu0 %v334, 16
      %v961 = vpop.permute.xlu0 %960
      %962 = vrot.lane.b32.xlu0 %v335, 16
      %v963 = vpop.permute.xlu0 %962
      %964 = vrot.lane.b32.xlu0 %v336, 16
      %v965 = vpop.permute.xlu0 %964
      %966 = vrot.lane.b32.xlu0 %v337, 16
      %v967 = vpop.permute.xlu0 %966
      %968 = vrot.lane.b32.xlu0 %v338, 16
      %v969 = vpop.permute.xlu0 %968
      %970 = vrot.lane.b32.xlu0 %v339, 16
      %v971 = vpop.permute.xlu0 %970
      %972 = vrot.lane.b32.xlu0 %v340, 16
      %v973 = vpop.permute.xlu0 %972
      %974 = vrot.lane.b32.xlu0 %v341, 16
      %v975 = vpop.permute.xlu0 %974
      %976 = vrot.lane.b32.xlu0 %v342, 16
      %v977 = vpop.permute.xlu0 %976
      %978 = vrot.lane.b32.xlu0 %v343, 16
      %v979 = vpop.permute.xlu0 %978
      %1076 = vrot.lane.b32.xlu0 %v346, 24
      %v1077 = vpop.permute.xlu0 %1076
      %1078 = vrot.lane.b32.xlu0 %v347, 24
      %v1079 = vpop.permute.xlu0 %1078
      %1080 = vrot.lane.b32.xlu0 %v348, 24
      %v1081 = vpop.permute.xlu0 %1080
      %1082 = vrot.lane.b32.xlu0 %v349, 24
      %v1083 = vpop.permute.xlu0 %1082
      %1084 = vrot.lane.b32.xlu0 %v350, 24
      %v1085 = vpop.permute.xlu0 %1084
      %1086 = vrot.lane.b32.xlu0 %v351, 24
      %v1087 = vpop.permute.xlu0 %1086
      %1088 = vrot.lane.b32.xlu0 %v352, 24
      %v1089 = vpop.permute.xlu0 %1088
      %1090 = vrot.lane.b32.xlu0 %v353, 24
      %v1091 = vpop.permute.xlu0 %1090
      %1092 = vrot.lane.b32.xlu0 %v354, 24
      %v1093 = vpop.permute.xlu0 %1092
      %1094 = vrot.lane.b32.xlu0 %v355, 24
      %v1095 = vpop.permute.xlu0 %1094
      %1096 = vrot.lane.b32.xlu0 %v356, 24
      %v1097 = vpop.permute.xlu0 %1096
      %1098 = vrot.lane.b32.xlu0 %v357, 24
      %v1099 = vpop.permute.xlu0 %1098
      %1100 = vrot.lane.b32.xlu0 %v358, 24
      %v1101 = vpop.permute.xlu0 %1100
      %1102 = vrot.lane.b32.xlu0 %v359, 24
      %v1103 = vpop.permute.xlu0 %1102
      %1104 = vrot.lane.b32.xlu0 %v360, 24
      %v1105 = vpop.permute.xlu0 %1104
      %1106 = vrot.lane.b32.xlu0 %v361, 24
      %v1107 = vpop.permute.xlu0 %1106
      %1108 = vrot.lane.b32.xlu0 %v362, 24
      %v1109 = vpop.permute.xlu0 %1108
      %1110 = vrot.lane.b32.xlu0 %v363, 24
      %v1111 = vpop.permute.xlu0 %1110
      %1112 = vrot.lane.b32.xlu0 %v364, 24
      %v1113 = vpop.permute.xlu0 %1112
      %1114 = vrot.lane.b32.xlu0 %v365, 24
      %v1115 = vpop.permute.xlu0 %1114
      %1116 = vrot.lane.b32.xlu0 %v366, 24
      %v1117 = vpop.permute.xlu0 %1116
      %1118 = vrot.lane.b32.xlu0 %v367, 24
      %v1119 = vpop.permute.xlu0 %1118
      %1120 = vrot.lane.b32.xlu0 %v368, 24
      %v1121 = vpop.permute.xlu0 %1120
      %1122 = vrot.lane.b32.xlu0 %v369, 24
      %v1123 = vpop.permute.xlu0 %1122
      %1124 = vrot.lane.b32.xlu0 %v370, 24
      %v1125 = vpop.permute.xlu0 %1124
      %1126 = vrot.lane.b32.xlu0 %v371, 24
      %v1127 = vpop.permute.xlu0 %1126
      %1128 = vrot.lane.b32.xlu0 %v372, 24
      %v1129 = vpop.permute.xlu0 %1128
      %1130 = vrot.lane.b32.xlu0 %v373, 24
      %v1131 = vpop.permute.xlu0 %1130
      %1132 = vrot.lane.b32.xlu0 %v374, 24
      %v1133 = vpop.permute.xlu0 %1132
      %1134 = vrot.lane.b32.xlu0 %v375, 24
      %v1135 = vpop.permute.xlu0 %1134
      %1136 = vrot.lane.b32.xlu0 %v376, 24
      %v1137 = vpop.permute.xlu0 %1136
      %1138 = vrot.lane.b32.xlu0 %v377, 24
      %v1139 = vpop.permute.xlu0 %1138
      %1140 = vrot.lane.b32.xlu0 %v378, 24
      %v1141 = vpop.permute.xlu0 %1140
      %1142 = vrot.lane.b32.xlu0 %v379, 24
      %v1143 = vpop.permute.xlu0 %1142
      %1144 = vrot.lane.b32.xlu0 %v380, 24
      %v1145 = vpop.permute.xlu0 %1144
      %1146 = vrot.lane.b32.xlu0 %v381, 24
      %v1147 = vpop.permute.xlu0 %1146
      %1148 = vrot.lane.b32.xlu0 %v382, 24
      %v1149 = vpop.permute.xlu0 %1148
      %1150 = vrot.lane.b32.xlu0 %v383, 24
      %v1151 = vpop.permute.xlu0 %1150
      %1152 = vrot.lane.b32.xlu0 %v384, 24
      %v1153 = vpop.permute.xlu0 %1152
      %1154 = vrot.lane.b32.xlu0 %v385, 24
      %v1155 = vpop.permute.xlu0 %1154
      %1156 = vrot.lane.b32.xlu0 %v386, 24
      %v1157 = vpop.permute.xlu0 %1156
      %1158 = vrot.lane.b32.xlu0 %v387, 24
      %v1159 = vpop.permute.xlu0 %1158
      %1160 = vrot.lane.b32.xlu0 %v388, 24
      %v1161 = vpop.permute.xlu0 %1160
      %1162 = vrot.lane.b32.xlu0 %v389, 24
      %v1163 = vpop.permute.xlu0 %1162
      %1164 = vrot.lane.b32.xlu0 %v390, 24
      %v1165 = vpop.permute.xlu0 %1164
      %1166 = vrot.lane.b32.xlu0 %v391, 24
      %v1167 = vpop.permute.xlu0 %1166
      %1168 = vrot.lane.b32.xlu0 %v392, 24
      %v1169 = vpop.permute.xlu0 %1168
      %1170 = vrot.lane.b32.xlu0 %v393, 24
      %v1171 = vpop.permute.xlu0 %1170
      %1268 = vrot.lane.b32.xlu0 %v396, 32
      %v1269 = vpop.permute.xlu0 %1268
      %1270 = vrot.lane.b32.xlu0 %v397, 32
      %v1271 = vpop.permute.xlu0 %1270
      %1272 = vrot.lane.b32.xlu0 %v398, 32
      %v1273 = vpop.permute.xlu0 %1272
      %1274 = vrot.lane.b32.xlu0 %v399, 32
      %v1275 = vpop.permute.xlu0 %1274
      %1276 = vrot.lane.b32.xlu0 %v400, 32
      %v1277 = vpop.permute.xlu0 %1276
      %1278 = vrot.lane.b32.xlu0 %v401, 32
      %v1279 = vpop.permute.xlu0 %1278
      %1280 = vrot.lane.b32.xlu0 %v402, 32
      %v1281 = vpop.permute.xlu0 %1280
      %1282 = vrot.lane.b32.xlu0 %v403, 32
      %v1283 = vpop.permute.xlu0 %1282
      %1284 = vrot.lane.b32.xlu0 %v404, 32
      %v1285 = vpop.permute.xlu0 %1284
      %1286 = vrot.lane.b32.xlu0 %v405, 32
      %v1287 = vpop.permute.xlu0 %1286
      %1288 = vrot.lane.b32.xlu0 %v406, 32
      %v1289 = vpop.permute.xlu0 %1288
      %1290 = vrot.lane.b32.xlu0 %v407, 32
      %v1291 = vpop.permute.xlu0 %1290
      %1292 = vrot.lane.b32.xlu0 %v408, 32
      %v1293 = vpop.permute.xlu0 %1292
      %1294 = vrot.lane.b32.xlu0 %v409, 32
      %v1295 = vpop.permute.xlu0 %1294
      %1296 = vrot.lane.b32.xlu0 %v410, 32
      %v1297 = vpop.permute.xlu0 %1296
      %1298 = vrot.lane.b32.xlu0 %v411, 32
      %v1299 = vpop.permute.xlu0 %1298
      %1300 = vrot.lane.b32.xlu0 %v412, 32
      %v1301 = vpop.permute.xlu0 %1300
      %1302 = vrot.lane.b32.xlu0 %v413, 32
      %v1303 = vpop.permute.xlu0 %1302
      %1304 = vrot.lane.b32.xlu0 %v414, 32
      %v1305 = vpop.permute.xlu0 %1304
      %1306 = vrot.lane.b32.xlu0 %v415, 32
      %v1307 = vpop.permute.xlu0 %1306
      %1308 = vrot.lane.b32.xlu0 %v416, 32
      %v1309 = vpop.permute.xlu0 %1308
      %1310 = vrot.lane.b32.xlu0 %v417, 32
      %v1311 = vpop.permute.xlu0 %1310
      %1312 = vrot.lane.b32.xlu0 %v418, 32
      %v1313 = vpop.permute.xlu0 %1312
      %1314 = vrot.lane.b32.xlu0 %v419, 32
      %v1315 = vpop.permute.xlu0 %1314
      %1316 = vrot.lane.b32.xlu0 %v420, 32
      %v1317 = vpop.permute.xlu0 %1316
      %1318 = vrot.lane.b32.xlu0 %v421, 32
      %v1319 = vpop.permute.xlu0 %1318
      %1320 = vrot.lane.b32.xlu0 %v422, 32
      %v1321 = vpop.permute.xlu0 %1320
      %1322 = vrot.lane.b32.xlu0 %v423, 32
      %v1323 = vpop.permute.xlu0 %1322
      %1324 = vrot.lane.b32.xlu0 %v424, 32
      %v1325 = vpop.permute.xlu0 %1324
      %1326 = vrot.lane.b32.xlu0 %v425, 32
      %v1327 = vpop.permute.xlu0 %1326
      %1328 = vrot.lane.b32.xlu0 %v426, 32
      %v1329 = vpop.permute.xlu0 %1328
      %1330 = vrot.lane.b32.xlu0 %v427, 32
      %v1331 = vpop.permute.xlu0 %1330
      %1332 = vrot.lane.b32.xlu0 %v428, 32
      %v1333 = vpop.permute.xlu0 %1332
      %1334 = vrot.lane.b32.xlu0 %v429, 32
      %v1335 = vpop.permute.xlu0 %1334
      %1336 = vrot.lane.b32.xlu0 %v430, 32
      %v1337 = vpop.permute.xlu0 %1336
      %1338 = vrot.lane.b32.xlu0 %v431, 32
      %v1339 = vpop.permute.xlu0 %1338
      %1340 = vrot.lane.b32.xlu0 %v432, 32
      %v1341 = vpop.permute.xlu0 %1340
      %1342 = vrot.lane.b32.xlu0 %v433, 32
      %v1343 = vpop.permute.xlu0 %1342
      %1344 = vrot.lane.b32.xlu0 %v434, 32
      %v1345 = vpop.permute.xlu0 %1344
      %1346 = vrot.lane.b32.xlu0 %v435, 32
      %v1347 = vpop.permute.xlu0 %1346
      %1348 = vrot.lane.b32.xlu0 %v436, 32
      %v1349 = vpop.permute.xlu0 %1348
      %1350 = vrot.lane.b32.xlu0 %v437, 32
      %v1351 = vpop.permute.xlu0 %1350
      %1352 = vrot.lane.b32.xlu0 %v438, 32
      %v1353 = vpop.permute.xlu0 %1352
      %1354 = vrot.lane.b32.xlu0 %v439, 32
      %v1355 = vpop.permute.xlu0 %1354
      %1356 = vrot.lane.b32.xlu0 %v440, 32
      %v1357 = vpop.permute.xlu0 %1356
      %1358 = vrot.lane.b32.xlu0 %v441, 32
      %v1359 = vpop.permute.xlu0 %1358
      %1360 = vrot.lane.b32.xlu0 %v442, 32
      %v1361 = vpop.permute.xlu0 %1360
      %1362 = vrot.lane.b32.xlu0 %v443, 32
      %v1363 = vpop.permute.xlu0 %1362
      %1460 = vrot.lane.b32.xlu0 %v446, 40
      %v1461 = vpop.permute.xlu0 %1460
      %1462 = vrot.lane.b32.xlu0 %v447, 40
      %v1463 = vpop.permute.xlu0 %1462
      %1464 = vrot.lane.b32.xlu0 %v448, 40
      %v1465 = vpop.permute.xlu0 %1464
      %1466 = vrot.lane.b32.xlu0 %v449, 40
      %v1467 = vpop.permute.xlu0 %1466
      %1468 = vrot.lane.b32.xlu0 %v450, 40
      %v1469 = vpop.permute.xlu0 %1468
      %1470 = vrot.lane.b32.xlu0 %v451, 40
      %v1471 = vpop.permute.xlu0 %1470
      %1472 = vrot.lane.b32.xlu0 %v452, 40
      %v1473 = vpop.permute.xlu0 %1472
      %1474 = vrot.lane.b32.xlu0 %v453, 40
      %v1475 = vpop.permute.xlu0 %1474
      %1476 = vrot.lane.b32.xlu0 %v454, 40
      %v1477 = vpop.permute.xlu0 %1476
      %1478 = vrot.lane.b32.xlu0 %v455, 40
      %v1479 = vpop.permute.xlu0 %1478
      %1480 = vrot.lane.b32.xlu0 %v456, 40
      %v1481 = vpop.permute.xlu0 %1480
      %1482 = vrot.lane.b32.xlu0 %v457, 40
      %v1483 = vpop.permute.xlu0 %1482
      %1484 = vrot.lane.b32.xlu0 %v458, 40
      %v1485 = vpop.permute.xlu0 %1484
      %1486 = vrot.lane.b32.xlu0 %v459, 40
      %v1487 = vpop.permute.xlu0 %1486
      %1488 = vrot.lane.b32.xlu0 %v460, 40
      %v1489 = vpop.permute.xlu0 %1488
      %1490 = vrot.lane.b32.xlu0 %v461, 40
      %v1491 = vpop.permute.xlu0 %1490
      %1492 = vrot.lane.b32.xlu0 %v462, 40
      %v1493 = vpop.permute.xlu0 %1492
      %1494 = vrot.lane.b32.xlu0 %v463, 40
      %v1495 = vpop.permute.xlu0 %1494
      %1496 = vrot.lane.b32.xlu0 %v464, 40
      %v1497 = vpop.permute.xlu0 %1496
      %1498 = vrot.lane.b32.xlu0 %v465, 40
      %v1499 = vpop.permute.xlu0 %1498
      %1500 = vrot.lane.b32.xlu0 %v466, 40
      %v1501 = vpop.permute.xlu0 %1500
      %1502 = vrot.lane.b32.xlu0 %v467, 40
      %v1503 = vpop.permute.xlu0 %1502
      %1504 = vrot.lane.b32.xlu0 %v468, 40
      %v1505 = vpop.permute.xlu0 %1504
      %1506 = vrot.lane.b32.xlu0 %v469, 40
      %v1507 = vpop.permute.xlu0 %1506
      %1508 = vrot.lane.b32.xlu0 %v470, 40
      %v1509 = vpop.permute.xlu0 %1508
      %1510 = vrot.lane.b32.xlu0 %v471, 40
      %v1511 = vpop.permute.xlu0 %1510
      %1512 = vrot.lane.b32.xlu0 %v472, 40
      %v1513 = vpop.permute.xlu0 %1512
      %1514 = vrot.lane.b32.xlu0 %v473, 40
      %v1515 = vpop.permute.xlu0 %1514
      %1516 = vrot.lane.b32.xlu0 %v474, 40
      %v1517 = vpop.permute.xlu0 %1516
      %1518 = vrot.lane.b32.xlu0 %v475, 40
      %v1519 = vpop.permute.xlu0 %1518
      %1520 = vrot.lane.b32.xlu0 %v476, 40
      %v1521 = vpop.permute.xlu0 %1520
      %1522 = vrot.lane.b32.xlu0 %v477, 40
      %v1523 = vpop.permute.xlu0 %1522
      %1524 = vrot.lane.b32.xlu0 %v478, 40
      %v1525 = vpop.permute.xlu0 %1524
      %1526 = vrot.lane.b32.xlu0 %v479, 40
      %v1527 = vpop.permute.xlu0 %1526
      %1528 = vrot.lane.b32.xlu0 %v480, 40
      %v1529 = vpop.permute.xlu0 %1528
      %1530 = vrot.lane.b32.xlu0 %v481, 40
      %v1531 = vpop.permute.xlu0 %1530
      %1532 = vrot.lane.b32.xlu0 %v482, 40
      %v1533 = vpop.permute.xlu0 %1532
      %1534 = vrot.lane.b32.xlu0 %v483, 40
      %v1535 = vpop.permute.xlu0 %1534
      %1536 = vrot.lane.b32.xlu0 %v484, 40
      %v1537 = vpop.permute.xlu0 %1536
      %1538 = vrot.lane.b32.xlu0 %v485, 40
      %v1539 = vpop.permute.xlu0 %1538
      %1540 = vrot.lane.b32.xlu0 %v486, 40
      %v1541 = vpop.permute.xlu0 %1540
      %1542 = vrot.lane.b32.xlu0 %v487, 40
      %v1543 = vpop.permute.xlu0 %1542
      %1544 = vrot.lane.b32.xlu0 %v488, 40
      %v1545 = vpop.permute.xlu0 %1544
      %1546 = vrot.lane.b32.xlu0 %v489, 40
      %v1547 = vpop.permute.xlu0 %1546
      %1548 = vrot.lane.b32.xlu0 %v490, 40
      %v1549 = vpop.permute.xlu0 %1548
      %1550 = vrot.lane.b32.xlu0 %v491, 40
      %v1551 = vpop.permute.xlu0 %1550
      %1552 = vrot.lane.b32.xlu0 %v492, 40
      %v1553 = vpop.permute.xlu0 %1552
      %1554 = vrot.lane.b32.xlu0 %v493, 40
      %v1555 = vpop.permute.xlu0 %1554
      %1652 = vrot.lane.b32.xlu0 %v496, 48
      %v1653 = vpop.permute.xlu0 %1652
      %1654 = vrot.lane.b32.xlu0 %v497, 48
      %v1655 = vpop.permute.xlu0 %1654
      %1656 = vrot.lane.b32.xlu0 %v498, 48
      %v1657 = vpop.permute.xlu0 %1656
      %1658 = vrot.lane.b32.xlu0 %v499, 48
      %v1659 = vpop.permute.xlu0 %1658
      %1660 = vrot.lane.b32.xlu0 %v500, 48
      %v1661 = vpop.permute.xlu0 %1660
      %1662 = vrot.lane.b32.xlu0 %v501, 48
      %v1663 = vpop.permute.xlu0 %1662
      %1664 = vrot.lane.b32.xlu0 %v502, 48
      %v1665 = vpop.permute.xlu0 %1664
      %1666 = vrot.lane.b32.xlu0 %v503, 48
      %v1667 = vpop.permute.xlu0 %1666
      %1668 = vrot.lane.b32.xlu0 %v504, 48
      %v1669 = vpop.permute.xlu0 %1668
      %1670 = vrot.lane.b32.xlu0 %v505, 48
      %v1671 = vpop.permute.xlu0 %1670
      %1672 = vrot.lane.b32.xlu0 %v506, 48
      %v1673 = vpop.permute.xlu0 %1672
      %1674 = vrot.lane.b32.xlu0 %v507, 48
      %v1675 = vpop.permute.xlu0 %1674
      %1676 = vrot.lane.b32.xlu0 %v508, 48
      %v1677 = vpop.permute.xlu0 %1676
      %1678 = vrot.lane.b32.xlu0 %v509, 48
      %v1679 = vpop.permute.xlu0 %1678
      %1680 = vrot.lane.b32.xlu0 %v510, 48
      %v1681 = vpop.permute.xlu0 %1680
      %1682 = vrot.lane.b32.xlu0 %v511, 48
      %v1683 = vpop.permute.xlu0 %1682
      %1684 = vrot.lane.b32.xlu0 %v512, 48
      %v1685 = vpop.permute.xlu0 %1684
      %1686 = vrot.lane.b32.xlu0 %v513, 48
      %v1687 = vpop.permute.xlu0 %1686
      %1688 = vrot.lane.b32.xlu0 %v514, 48
      %v1689 = vpop.permute.xlu0 %1688
      %1690 = vrot.lane.b32.xlu0 %v515, 48
      %v1691 = vpop.permute.xlu0 %1690
      %1692 = vrot.lane.b32.xlu0 %v516, 48
      %v1693 = vpop.permute.xlu0 %1692
      %1694 = vrot.lane.b32.xlu0 %v517, 48
      %v1695 = vpop.permute.xlu0 %1694
      %1696 = vrot.lane.b32.xlu0 %v518, 48
      %v1697 = vpop.permute.xlu0 %1696
      %1698 = vrot.lane.b32.xlu0 %v519, 48
      %v1699 = vpop.permute.xlu0 %1698
      %1700 = vrot.lane.b32.xlu0 %v520, 48
      %v1701 = vpop.permute.xlu0 %1700
      %1702 = vrot.lane.b32.xlu0 %v521, 48
      %v1703 = vpop.permute.xlu0 %1702
      %1704 = vrot.lane.b32.xlu0 %v522, 48
      %v1705 = vpop.permute.xlu0 %1704
      %1706 = vrot.lane.b32.xlu0 %v523, 48
      %v1707 = vpop.permute.xlu0 %1706
      %1708 = vrot.lane.b32.xlu0 %v524, 48
      %v1709 = vpop.permute.xlu0 %1708
      %1710 = vrot.lane.b32.xlu0 %v525, 48
      %v1711 = vpop.permute.xlu0 %1710
      %1712 = vrot.lane.b32.xlu0 %v526, 48
      %v1713 = vpop.permute.xlu0 %1712
      %1714 = vrot.lane.b32.xlu0 %v527, 48
      %v1715 = vpop.permute.xlu0 %1714
      %1716 = vrot.lane.b32.xlu0 %v528, 48
      %v1717 = vpop.permute.xlu0 %1716
      %1718 = vrot.lane.b32.xlu0 %v529, 48
      %v1719 = vpop.permute.xlu0 %1718
      %1720 = vrot.lane.b32.xlu0 %v530, 48
      %v1721 = vpop.permute.xlu0 %1720
      %1722 = vrot.lane.b32.xlu0 %v531, 48
      %v1723 = vpop.permute.xlu0 %1722
      %1724 = vrot.lane.b32.xlu0 %v532, 48
      %v1725 = vpop.permute.xlu0 %1724
      %1726 = vrot.lane.b32.xlu0 %v533, 48
      %v1727 = vpop.permute.xlu0 %1726
      %1728 = vrot.lane.b32.xlu0 %v534, 48
      %v1729 = vpop.permute.xlu0 %1728
      %1730 = vrot.lane.b32.xlu0 %v535, 48
      %v1731 = vpop.permute.xlu0 %1730
      %1732 = vrot.lane.b32.xlu0 %v536, 48
      %v1733 = vpop.permute.xlu0 %1732
      %1734 = vrot.lane.b32.xlu0 %v537, 48
      %v1735 = vpop.permute.xlu0 %1734
      %1736 = vrot.lane.b32.xlu0 %v538, 48
      %v1737 = vpop.permute.xlu0 %1736
      %1738 = vrot.lane.b32.xlu0 %v539, 48
      %v1739 = vpop.permute.xlu0 %1738
      %1740 = vrot.lane.b32.xlu0 %v540, 48
      %v1741 = vpop.permute.xlu0 %1740
      %1742 = vrot.lane.b32.xlu0 %v541, 48
      %v1743 = vpop.permute.xlu0 %1742
      %1744 = vrot.lane.b32.xlu0 %v542, 48
      %v1745 = vpop.permute.xlu0 %1744
      %1746 = vrot.lane.b32.xlu0 %v543, 48
      %v1747 = vpop.permute.xlu0 %1746
      %1844 = vrot.lane.b32.xlu0 %v546, 56
      %v1845 = vpop.permute.xlu0 %1844
      %1846 = vrot.lane.b32.xlu0 %v547, 56
      %v1847 = vpop.permute.xlu0 %1846
      %1848 = vrot.lane.b32.xlu0 %v548, 56
      %v1849 = vpop.permute.xlu0 %1848
      %1850 = vrot.lane.b32.xlu0 %v549, 56
      %v1851 = vpop.permute.xlu0 %1850
      %1852 = vrot.lane.b32.xlu0 %v550, 56
      %v1853 = vpop.permute.xlu0 %1852
      %1854 = vrot.lane.b32.xlu0 %v551, 56
      %v1855 = vpop.permute.xlu0 %1854
      %1856 = vrot.lane.b32.xlu0 %v552, 56
      %v1857 = vpop.permute.xlu0 %1856
      %1858 = vrot.lane.b32.xlu0 %v553, 56
      %v1859 = vpop.permute.xlu0 %1858
      %1860 = vrot.lane.b32.xlu0 %v554, 56
      %v1861 = vpop.permute.xlu0 %1860
      %1862 = vrot.lane.b32.xlu0 %v555, 56
      %v1863 = vpop.permute.xlu0 %1862
      %1864 = vrot.lane.b32.xlu0 %v556, 56
      %v1865 = vpop.permute.xlu0 %1864
      %1866 = vrot.lane.b32.xlu0 %v557, 56
      %v1867 = vpop.permute.xlu0 %1866
      %1868 = vrot.lane.b32.xlu0 %v558, 56
      %v1869 = vpop.permute.xlu0 %1868
      %1870 = vrot.lane.b32.xlu0 %v559, 56
      %v1871 = vpop.permute.xlu0 %1870
      %1872 = vrot.lane.b32.xlu0 %v560, 56
      %v1873 = vpop.permute.xlu0 %1872
      %1874 = vrot.lane.b32.xlu0 %v561, 56
      %v1875 = vpop.permute.xlu0 %1874
      %1876 = vrot.lane.b32.xlu0 %v562, 56
      %v1877 = vpop.permute.xlu0 %1876
      %1878 = vrot.lane.b32.xlu0 %v563, 56
      %v1879 = vpop.permute.xlu0 %1878
      %1880 = vrot.lane.b32.xlu0 %v564, 56
      %v1881 = vpop.permute.xlu0 %1880
      %1882 = vrot.lane.b32.xlu0 %v565, 56
      %v1883 = vpop.permute.xlu0 %1882
      %1884 = vrot.lane.b32.xlu0 %v566, 56
      %v1885 = vpop.permute.xlu0 %1884
      %1886 = vrot.lane.b32.xlu0 %v567, 56
      %v1887 = vpop.permute.xlu0 %1886
      %1888 = vrot.lane.b32.xlu0 %v568, 56
      %v1889 = vpop.permute.xlu0 %1888
      %1890 = vrot.lane.b32.xlu0 %v569, 56
      %v1891 = vpop.permute.xlu0 %1890
      %1892 = vrot.lane.b32.xlu0 %v570, 56
      %v1893 = vpop.permute.xlu0 %1892
      %1894 = vrot.lane.b32.xlu0 %v571, 56
      %v1895 = vpop.permute.xlu0 %1894
      %1896 = vrot.lane.b32.xlu0 %v572, 56
      %v1897 = vpop.permute.xlu0 %1896
      %1898 = vrot.lane.b32.xlu0 %v573, 56
      %v1899 = vpop.permute.xlu0 %1898
      %1900 = vrot.lane.b32.xlu0 %v574, 56
      %v1901 = vpop.permute.xlu0 %1900
      %1902 = vrot.lane.b32.xlu0 %v575, 56
      %v1903 = vpop.permute.xlu0 %1902
      %1904 = vrot.lane.b32.xlu0 %v576, 56
      %v1905 = vpop.permute.xlu0 %1904
      %1906 = vrot.lane.b32.xlu0 %v577, 56
      %v1907 = vpop.permute.xlu0 %1906
      %1908 = vrot.lane.b32.xlu0 %v578, 56
      %v1909 = vpop.permute.xlu0 %1908
      %1910 = vrot.lane.b32.xlu0 %v579, 56
      %v1911 = vpop.permute.xlu0 %1910
      %1912 = vrot.lane.b32.xlu0 %v580, 56
      %v1913 = vpop.permute.xlu0 %1912
      %1914 = vrot.lane.b32.xlu0 %v581, 56
      %v1915 = vpop.permute.xlu0 %1914
      %1916 = vrot.lane.b32.xlu0 %v582, 56
      %v1917 = vpop.permute.xlu0 %1916
      %1918 = vrot.lane.b32.xlu0 %v583, 56
      %v1919 = vpop.permute.xlu0 %1918
      %1920 = vrot.lane.b32.xlu0 %v584, 56
      %v1921 = vpop.permute.xlu0 %1920
      %1922 = vrot.lane.b32.xlu0 %v585, 56
      %v1923 = vpop.permute.xlu0 %1922
      %1924 = vrot.lane.b32.xlu0 %v586, 56
      %v1925 = vpop.permute.xlu0 %1924
      %1926 = vrot.lane.b32.xlu0 %v587, 56
      %v1927 = vpop.permute.xlu0 %1926
      %1928 = vrot.lane.b32.xlu0 %v588, 56
      %v1929 = vpop.permute.xlu0 %1928
      %1930 = vrot.lane.b32.xlu0 %v589, 56
      %v1931 = vpop.permute.xlu0 %1930
      %1932 = vrot.lane.b32.xlu0 %v590, 56
      %v1933 = vpop.permute.xlu0 %1932
      %1934 = vrot.lane.b32.xlu0 %v591, 56
      %v1935 = vpop.permute.xlu0 %1934
      %1936 = vrot.lane.b32.xlu0 %v592, 56
      %v1937 = vpop.permute.xlu0 %1936
      %1938 = vrot.lane.b32.xlu0 %v593, 56
      %v1939 = vpop.permute.xlu0 %1938
      %2036 = vrot.lane.b32.xlu0 %v596, 64
      %v2037 = vpop.permute.xlu0 %2036
      %2038 = vrot.lane.b32.xlu0 %v597, 64
      %v2039 = vpop.permute.xlu0 %2038
      %2040 = vrot.lane.b32.xlu0 %v598, 64
      %v2041 = vpop.permute.xlu0 %2040
      %2042 = vrot.lane.b32.xlu0 %v599, 64
      %v2043 = vpop.permute.xlu0 %2042
      %2044 = vrot.lane.b32.xlu0 %v600, 64
      %v2045 = vpop.permute.xlu0 %2044
      %2046 = vrot.lane.b32.xlu0 %v601, 64
      %v2047 = vpop.permute.xlu0 %2046
      %2048 = vrot.lane.b32.xlu0 %v602, 64
      %v2049 = vpop.permute.xlu0 %2048
      %2050 = vrot.lane.b32.xlu0 %v603, 64
      %v2051 = vpop.permute.xlu0 %2050
      %2052 = vrot.lane.b32.xlu0 %v604, 64
      %v2053 = vpop.permute.xlu0 %2052
      %2054 = vrot.lane.b32.xlu0 %v605, 64
      %v2055 = vpop.permute.xlu0 %2054
      %2056 = vrot.lane.b32.xlu0 %v606, 64
      %v2057 = vpop.permute.xlu0 %2056
      %2058 = vrot.lane.b32.xlu0 %v607, 64
      %v2059 = vpop.permute.xlu0 %2058
      %2060 = vrot.lane.b32.xlu0 %v608, 64
      %v2061 = vpop.permute.xlu0 %2060
      %2062 = vrot.lane.b32.xlu0 %v609, 64
      %v2063 = vpop.permute.xlu0 %2062
      %2064 = vrot.lane.b32.xlu0 %v610, 64
      %v2065 = vpop.permute.xlu0 %2064
      %2066 = vrot.lane.b32.xlu0 %v611, 64
      %v2067 = vpop.permute.xlu0 %2066
      %2068 = vrot.lane.b32.xlu0 %v612, 64
      %v2069 = vpop.permute.xlu0 %2068
      %2070 = vrot.lane.b32.xlu0 %v613, 64
      %v2071 = vpop.permute.xlu0 %2070
      %2072 = vrot.lane.b32.xlu0 %v614, 64
      %v2073 = vpop.permute.xlu0 %2072
      %2074 = vrot.lane.b32.xlu0 %v615, 64
      %v2075 = vpop.permute.xlu0 %2074
      %2076 = vrot.lane.b32.xlu0 %v616, 64
      %v2077 = vpop.permute.xlu0 %2076
      %2078 = vrot.lane.b32.xlu0 %v617, 64
      %v2079 = vpop.permute.xlu0 %2078
      %2080 = vrot.lane.b32.xlu0 %v618, 64
      %v2081 = vpop.permute.xlu0 %2080
      %2082 = vrot.lane.b32.xlu0 %v619, 64
      %v2083 = vpop.permute.xlu0 %2082
      %2084 = vrot.lane.b32.xlu0 %v620, 64
      %v2085 = vpop.permute.xlu0 %2084
      %2086 = vrot.lane.b32.xlu0 %v621, 64
      %v2087 = vpop.permute.xlu0 %2086
      %2088 = vrot.lane.b32.xlu0 %v622, 64
      %v2089 = vpop.permute.xlu0 %2088
      %2090 = vrot.lane.b32.xlu0 %v623, 64
      %v2091 = vpop.permute.xlu0 %2090
      %2092 = vrot.lane.b32.xlu0 %v624, 64
      %v2093 = vpop.permute.xlu0 %2092
      %2094 = vrot.lane.b32.xlu0 %v625, 64
      %v2095 = vpop.permute.xlu0 %2094
      %2096 = vrot.lane.b32.xlu0 %v626, 64
      %v2097 = vpop.permute.xlu0 %2096
      %2098 = vrot.lane.b32.xlu0 %v627, 64
      %v2099 = vpop.permute.xlu0 %2098
      %2100 = vrot.lane.b32.xlu0 %v628, 64
      %v2101 = vpop.permute.xlu0 %2100
      %2102 = vrot.lane.b32.xlu0 %v629, 64
      %v2103 = vpop.permute.xlu0 %2102
      %2104 = vrot.lane.b32.xlu0 %v630, 64
      %v2105 = vpop.permute.xlu0 %2104
      %2106 = vrot.lane.b32.xlu0 %v631, 64
      %v2107 = vpop.permute.xlu0 %2106
      %2108 = vrot.lane.b32.xlu0 %v632, 64
      %v2109 = vpop.permute.xlu0 %2108
      %2110 = vrot.lane.b32.xlu0 %v633, 64
      %v2111 = vpop.permute.xlu0 %2110
      %2112 = vrot.lane.b32.xlu0 %v634, 64
      %v2113 = vpop.permute.xlu0 %2112
      %2114 = vrot.lane.b32.xlu0 %v635, 64
      %v2115 = vpop.permute.xlu0 %2114
      %2116 = vrot.lane.b32.xlu0 %v636, 64
      %v2117 = vpop.permute.xlu0 %2116
      %2118 = vrot.lane.b32.xlu0 %v637, 64
      %v2119 = vpop.permute.xlu0 %2118
      %2120 = vrot.lane.b32.xlu0 %v638, 64
      %v2121 = vpop.permute.xlu0 %2120
      %2122 = vrot.lane.b32.xlu0 %v639, 64
      %v2123 = vpop.permute.xlu0 %2122
      %2124 = vrot.lane.b32.xlu0 %v640, 64
      %v2125 = vpop.permute.xlu0 %2124
      %2126 = vrot.lane.b32.xlu0 %v641, 64
      %v2127 = vpop.permute.xlu0 %2126
      %2128 = vrot.lane.b32.xlu0 %v642, 64
      %v2129 = vpop.permute.xlu0 %2128
      %2130 = vrot.lane.b32.xlu0 %v643, 64
      %v2131 = vpop.permute.xlu0 %2130
      %vm2180 = vcmask 64512
      %v2181 = vsel %vm2180, %v196, %v693
      %v2182 = vsel %vm2180, %v197, %v695
      %v2183 = vsel %vm2180, %v198, %v697
      %v2184 = vsel %vm2180, %v199, %v699
      %v2185 = vsel %vm2180, %v200, %v701
      %v2186 = vsel %vm2180, %v201, %v703
      %v2187 = vsel %vm2180, %v202, %v705
      %v2188 = vsel %vm2180, %v203, %v707
      %v2189 = vsel %vm2180, %v204, %v709
      %v2190 = vsel %vm2180, %v205, %v711
      %v2191 = vsel %vm2180, %v206, %v713
      %v2192 = vsel %vm2180, %v207, %v715
      %v2193 = vsel %vm2180, %v208, %v717
      %v2194 = vsel %vm2180, %v209, %v719
      %v2195 = vsel %vm2180, %v210, %v721
      %v2196 = vsel %vm2180, %v211, %v723
      %v2197 = vsel %vm2180, %v212, %v725
      %v2198 = vsel %vm2180, %v213, %v727
      %v2199 = vsel %vm2180, %v214, %v729
      %v2200 = vsel %vm2180, %v215, %v731
      %v2201 = vsel %vm2180, %v216, %v733
      %v2202 = vsel %vm2180, %v217, %v735
      %v2203 = vsel %vm2180, %v218, %v737
      %v2204 = vsel %vm2180, %v219, %v739
      %v2205 = vsel %vm2180, %v220, %v741
      %v2206 = vsel %vm2180, %v221, %v743
      %v2207 = vsel %vm2180, %v222, %v745
      %v2208 = vsel %vm2180, %v223, %v747
      %v2209 = vsel %vm2180, %v224, %v749
      %v2210 = vsel %vm2180, %v225, %v751
      %v2211 = vsel %vm2180, %v226, %v753
      %v2212 = vsel %vm2180, %v227, %v755
      %v2213 = vsel %vm2180, %v228, %v757
      %v2214 = vsel %vm2180, %v229, %v759
      %v2215 = vsel %vm2180, %v230, %v761
      %v2216 = vsel %vm2180, %v231, %v763
      %v2217 = vsel %vm2180, %v232, %v765
      %v2218 = vsel %vm2180, %v233, %v767
      %v2219 = vsel %vm2180, %v234, %v769
      %v2220 = vsel %vm2180, %v235, %v771
      %v2221 = vsel %vm2180, %v236, %v773
      %v2222 = vsel %vm2180, %v237, %v775
      %v2223 = vsel %vm2180, %v238, %v777
      %v2224 = vsel %vm2180, %v239, %v779
      %v2225 = vsel %vm2180, %v240, %v781
      %v2226 = vsel %vm2180, %v241, %v783
      %v2227 = vsel %vm2180, %v242, %v785
      %v2228 = vsel %vm2180, %v243, %v787
      %vm2229 = vcmask 130048
      %v2230 = vsel %vm2229, %v2181, %v885
      %v2231 = vsel %vm2229, %v2182, %v887
      %v2232 = vsel %vm2229, %v2183, %v889
      %v2233 = vsel %vm2229, %v2184, %v891
      %v2234 = vsel %vm2229, %v2185, %v893
      %v2235 = vsel %vm2229, %v2186, %v895
      %v2236 = vsel %vm2229, %v2187, %v897
      %v2237 = vsel %vm2229, %v2188, %v899
      %v2238 = vsel %vm2229, %v2189, %v901
      %v2239 = vsel %vm2229, %v2190, %v903
      %v2240 = vsel %vm2229, %v2191, %v905
      %v2241 = vsel %vm2229, %v2192, %v907
      %v2242 = vsel %vm2229, %v2193, %v909
      %v2243 = vsel %vm2229, %v2194, %v911
      %v2244 = vsel %vm2229, %v2195, %v913
      %v2245 = vsel %vm2229, %v2196, %v915
      %v2246 = vsel %vm2229, %v2197, %v917
      %v2247 = vsel %vm2229, %v2198, %v919
      %v2248 = vsel %vm2229, %v2199, %v921
      %v2249 = vsel %vm2229, %v2200, %v923
      %v2250 = vsel %vm2229, %v2201, %v925
      %v2251 = vsel %vm2229, %v2202, %v927
      %v2252 = vsel %vm2229, %v2203, %v929
      %v2253 = vsel %vm2229, %v2204, %v931
      %v2254 = vsel %vm2229, %v2205, %v933
      %v2255 = vsel %vm2229, %v2206, %v935
      %v2256 = vsel %vm2229, %v2207, %v937
      %v2257 = vsel %vm2229, %v2208, %v939
      %v2258 = vsel %vm2229, %v2209, %v941
      %v2259 = vsel %vm2229, %v2210, %v943
      %v2260 = vsel %vm2229, %v2211, %v945
      %v2261 = vsel %vm2229, %v2212, %v947
      %v2262 = vsel %vm2229, %v2213, %v949
      %v2263 = vsel %vm2229, %v2214, %v951
      %v2264 = vsel %vm2229, %v2215, %v953
      %v2265 = vsel %vm2229, %v2216, %v955
      %v2266 = vsel %vm2229, %v2217, %v957
      %v2267 = vsel %vm2229, %v2218, %v959
      %v2268 = vsel %vm2229, %v2219, %v961
      %v2269 = vsel %vm2229, %v2220, %v963
      %v2270 = vsel %vm2229, %v2221, %v965
      %v2271 = vsel %vm2229, %v2222, %v967
      %v2272 = vsel %vm2229, %v2223, %v969
      %v2273 = vsel %vm2229, %v2224, %v971
      %v2274 = vsel %vm2229, %v2225, %v973
      %v2275 = vsel %vm2229, %v2226, %v975
      %v2276 = vsel %vm2229, %v2227, %v977
      %v2277 = vsel %vm2229, %v2228, %v979
      %vm2278 = vcmask 195584
      %v2279 = vsel %vm2278, %v2230, %v1077
      %v2280 = vsel %vm2278, %v2231, %v1079
      %v2281 = vsel %vm2278, %v2232, %v1081
      %v2282 = vsel %vm2278, %v2233, %v1083
      %v2283 = vsel %vm2278, %v2234, %v1085
      %v2284 = vsel %vm2278, %v2235, %v1087
      %v2285 = vsel %vm2278, %v2236, %v1089
      %v2286 = vsel %vm2278, %v2237, %v1091
      %v2287 = vsel %vm2278, %v2238, %v1093
      %v2288 = vsel %vm2278, %v2239, %v1095
      %v2289 = vsel %vm2278, %v2240, %v1097
      %v2290 = vsel %vm2278, %v2241, %v1099
      %v2291 = vsel %vm2278, %v2242, %v1101
      %v2292 = vsel %vm2278, %v2243, %v1103
      %v2293 = vsel %vm2278, %v2244, %v1105
      %v2294 = vsel %vm2278, %v2245, %v1107
      %v2295 = vsel %vm2278, %v2246, %v1109
      %v2296 = vsel %vm2278, %v2247, %v1111
      %v2297 = vsel %vm2278, %v2248, %v1113
      %v2298 = vsel %vm2278, %v2249, %v1115
      %v2299 = vsel %vm2278, %v2250, %v1117
      %v2300 = vsel %vm2278, %v2251, %v1119
      %v2301 = vsel %vm2278, %v2252, %v1121
      %v2302 = vsel %vm2278, %v2253, %v1123
      %v2303 = vsel %vm2278, %v2254, %v1125
      %v2304 = vsel %vm2278, %v2255, %v1127
      %v2305 = vsel %vm2278, %v2256, %v1129
      %v2306 = vsel %vm2278, %v2257, %v1131
      %v2307 = vsel %vm2278, %v2258, %v1133
      %v2308 = vsel %vm2278, %v2259, %v1135
      %v2309 = vsel %vm2278, %v2260, %v1137
      %v2310 = vsel %vm2278, %v2261, %v1139
      %v2311 = vsel %vm2278, %v2262, %v1141
      %v2312 = vsel %vm2278, %v2263, %v1143
      %v2313 = vsel %vm2278, %v2264, %v1145
      %v2314 = vsel %vm2278, %v2265, %v1147
      %v2315 = vsel %vm2278, %v2266, %v1149
      %v2316 = vsel %vm2278, %v2267, %v1151
      %v2317 = vsel %vm2278, %v2268, %v1153
      %v2318 = vsel %vm2278, %v2269, %v1155
      %v2319 = vsel %vm2278, %v2270, %v1157
      %v2320 = vsel %vm2278, %v2271, %v1159
      %v2321 = vsel %vm2278, %v2272, %v1161
      %v2322 = vsel %vm2278, %v2273, %v1163
      %v2323 = vsel %vm2278, %v2274, %v1165
      %v2324 = vsel %vm2278, %v2275, %v1167
      %v2325 = vsel %vm2278, %v2276, %v1169
      %v2326 = vsel %vm2278, %v2277, %v1171
      %vm2327 = vcmask 261120
      %v2328 = vsel %vm2327, %v2279, %v1269
      %v2329 = vsel %vm2327, %v2280, %v1271
      %v2330 = vsel %vm2327, %v2281, %v1273
      %v2331 = vsel %vm2327, %v2282, %v1275
      %v2332 = vsel %vm2327, %v2283, %v1277
      %v2333 = vsel %vm2327, %v2284, %v1279
      %v2334 = vsel %vm2327, %v2285, %v1281
      %v2335 = vsel %vm2327, %v2286, %v1283
      %v2336 = vsel %vm2327, %v2287, %v1285
      %v2337 = vsel %vm2327, %v2288, %v1287
      %v2338 = vsel %vm2327, %v2289, %v1289
      %v2339 = vsel %vm2327, %v2290, %v1291
      %v2340 = vsel %vm2327, %v2291, %v1293
      %v2341 = vsel %vm2327, %v2292, %v1295
      %v2342 = vsel %vm2327, %v2293, %v1297
      %v2343 = vsel %vm2327, %v2294, %v1299
      %v2344 = vsel %vm2327, %v2295, %v1301
      %v2345 = vsel %vm2327, %v2296, %v1303
      %v2346 = vsel %vm2327, %v2297, %v1305
      %v2347 = vsel %vm2327, %v2298, %v1307
      %v2348 = vsel %vm2327, %v2299, %v1309
      %v2349 = vsel %vm2327, %v2300, %v1311
      %v2350 = vsel %vm2327, %v2301, %v1313
      %v2351 = vsel %vm2327, %v2302, %v1315
      %v2352 = vsel %vm2327, %v2303, %v1317
      %v2353 = vsel %vm2327, %v2304, %v1319
      %v2354 = vsel %vm2327, %v2305, %v1321
      %v2355 = vsel %vm2327, %v2306, %v1323
      %v2356 = vsel %vm2327, %v2307, %v1325
      %v2357 = vsel %vm2327, %v2308, %v1327
      %v2358 = vsel %vm2327, %v2309, %v1329
      %v2359 = vsel %vm2327, %v2310, %v1331
      %v2360 = vsel %vm2327, %v2311, %v1333
      %v2361 = vsel %vm2327, %v2312, %v1335
      %v2362 = vsel %vm2327, %v2313, %v1337
      %v2363 = vsel %vm2327, %v2314, %v1339
      %v2364 = vsel %vm2327, %v2315, %v1341
      %v2365 = vsel %vm2327, %v2316, %v1343
      %v2366 = vsel %vm2327, %v2317, %v1345
      %v2367 = vsel %vm2327, %v2318, %v1347
      %v2368 = vsel %vm2327, %v2319, %v1349
      %v2369 = vsel %vm2327, %v2320, %v1351
      %v2370 = vsel %vm2327, %v2321, %v1353
      %v2371 = vsel %vm2327, %v2322, %v1355
      %v2372 = vsel %vm2327, %v2323, %v1357
      %v2373 = vsel %vm2327, %v2324, %v1359
      %v2374 = vsel %vm2327, %v2325, %v1361
      %v2375 = vsel %vm2327, %v2326, %v1363
      %vm2376 = vcmask 326656
      %v2377 = vsel %vm2376, %v2328, %v1461
      %v2378 = vsel %vm2376, %v2329, %v1463
      %v2379 = vsel %vm2376, %v2330, %v1465
      %v2380 = vsel %vm2376, %v2331, %v1467
      %v2381 = vsel %vm2376, %v2332, %v1469
      %v2382 = vsel %vm2376, %v2333, %v1471
      %v2383 = vsel %vm2376, %v2334, %v1473
      %v2384 = vsel %vm2376, %v2335, %v1475
      %v2385 = vsel %vm2376, %v2336, %v1477
      %v2386 = vsel %vm2376, %v2337, %v1479
      %v2387 = vsel %vm2376, %v2338, %v1481
      %v2388 = vsel %vm2376, %v2339, %v1483
      %v2389 = vsel %vm2376, %v2340, %v1485
      %v2390 = vsel %vm2376, %v2341, %v1487
      %v2391 = vsel %vm2376, %v2342, %v1489
      %v2392 = vsel %vm2376, %v2343, %v1491
      %v2393 = vsel %vm2376, %v2344, %v1493
      %v2394 = vsel %vm2376, %v2345, %v1495
      %v2395 = vsel %vm2376, %v2346, %v1497
      %v2396 = vsel %vm2376, %v2347, %v1499
      %v2397 = vsel %vm2376, %v2348, %v1501
      %v2398 = vsel %vm2376, %v2349, %v1503
      %v2399 = vsel %vm2376, %v2350, %v1505
      %v2400 = vsel %vm2376, %v2351, %v1507
      %v2401 = vsel %vm2376, %v2352, %v1509
      %v2402 = vsel %vm2376, %v2353, %v1511
      %v2403 = vsel %vm2376, %v2354, %v1513
      %v2404 = vsel %vm2376, %v2355, %v1515
      %v2405 = vsel %vm2376, %v2356, %v1517
      %v2406 = vsel %vm2376, %v2357, %v1519
      %v2407 = vsel %vm2376, %v2358, %v1521
      %v2408 = vsel %vm2376, %v2359, %v1523
      %v2409 = vsel %vm2376, %v2360, %v1525
      %v2410 = vsel %vm2376, %v2361, %v1527
      %v2411 = vsel %vm2376, %v2362, %v1529
      %v2412 = vsel %vm2376, %v2363, %v1531
      %v2413 = vsel %vm2376, %v2364, %v1533
      %v2414 = vsel %vm2376, %v2365, %v1535
      %v2415 = vsel %vm2376, %v2366, %v1537
      %v2416 = vsel %vm2376, %v2367, %v1539
      %v2417 = vsel %vm2376, %v2368, %v1541
      %v2418 = vsel %vm2376, %v2369, %v1543
      %v2419 = vsel %vm2376, %v2370, %v1545
      %v2420 = vsel %vm2376, %v2371, %v1547
      %v2421 = vsel %vm2376, %v2372, %v1549
      %v2422 = vsel %vm2376, %v2373, %v1551
      %v2423 = vsel %vm2376, %v2374, %v1553
      %v2424 = vsel %vm2376, %v2375, %v1555
      %vm2425 = vcmask 392192
      %v2426 = vsel %vm2425, %v2377, %v1653
      %v2427 = vsel %vm2425, %v2378, %v1655
      %v2428 = vsel %vm2425, %v2379, %v1657
      %v2429 = vsel %vm2425, %v2380, %v1659
      %v2430 = vsel %vm2425, %v2381, %v1661
      %v2431 = vsel %vm2425, %v2382, %v1663
      %v2432 = vsel %vm2425, %v2383, %v1665
      %v2433 = vsel %vm2425, %v2384, %v1667
      %v2434 = vsel %vm2425, %v2385, %v1669
      %v2435 = vsel %vm2425, %v2386, %v1671
      %v2436 = vsel %vm2425, %v2387, %v1673
      %v2437 = vsel %vm2425, %v2388, %v1675
      %v2438 = vsel %vm2425, %v2389, %v1677
      %v2439 = vsel %vm2425, %v2390, %v1679
      %v2440 = vsel %vm2425, %v2391, %v1681
      %v2441 = vsel %vm2425, %v2392, %v1683
      %v2442 = vsel %vm2425, %v2393, %v1685
      %v2443 = vsel %vm2425, %v2394, %v1687
      %v2444 = vsel %vm2425, %v2395, %v1689
      %v2445 = vsel %vm2425, %v2396, %v1691
      %v2446 = vsel %vm2425, %v2397, %v1693
      %v2447 = vsel %vm2425, %v2398, %v1695
      %v2448 = vsel %vm2425, %v2399, %v1697
      %v2449 = vsel %vm2425, %v2400, %v1699
      %v2450 = vsel %vm2425, %v2401, %v1701
      %v2451 = vsel %vm2425, %v2402, %v1703
      %v2452 = vsel %vm2425, %v2403, %v1705
      %v2453 = vsel %vm2425, %v2404, %v1707
      %v2454 = vsel %vm2425, %v2405, %v1709
      %v2455 = vsel %vm2425, %v2406, %v1711
      %v2456 = vsel %vm2425, %v2407, %v1713
      %v2457 = vsel %vm2425, %v2408, %v1715
      %v2458 = vsel %vm2425, %v2409, %v1717
      %v2459 = vsel %vm2425, %v2410, %v1719
      %v2460 = vsel %vm2425, %v2411, %v1721
      %v2461 = vsel %vm2425, %v2412, %v1723
      %v2462 = vsel %vm2425, %v2413, %v1725
      %v2463 = vsel %vm2425, %v2414, %v1727
      %v2464 = vsel %vm2425, %v2415, %v1729
      %v2465 = vsel %vm2425, %v2416, %v1731
      %v2466 = vsel %vm2425, %v2417, %v1733
      %v2467 = vsel %vm2425, %v2418, %v1735
      %v2468 = vsel %vm2425, %v2419, %v1737
      %v2469 = vsel %vm2425, %v2420, %v1739
      %v2470 = vsel %vm2425, %v2421, %v1741
      %v2471 = vsel %vm2425, %v2422, %v1743
      %v2472 = vsel %vm2425, %v2423, %v1745
      %v2473 = vsel %vm2425, %v2424, %v1747
      %vm2474 = vcmask 457728
      %v2475 = vsel %vm2474, %v2426, %v1845
      %v2476 = vsel %vm2474, %v2427, %v1847
      %v2477 = vsel %vm2474, %v2428, %v1849
      %v2478 = vsel %vm2474, %v2429, %v1851
      %v2479 = vsel %vm2474, %v2430, %v1853
      %v2480 = vsel %vm2474, %v2431, %v1855
      %v2481 = vsel %vm2474, %v2432, %v1857
      %v2482 = vsel %vm2474, %v2433, %v1859
      %v2483 = vsel %vm2474, %v2434, %v1861
      %v2484 = vsel %vm2474, %v2435, %v1863
      %v2485 = vsel %vm2474, %v2436, %v1865
      %v2486 = vsel %vm2474, %v2437, %v1867
      %v2487 = vsel %vm2474, %v2438, %v1869
      %v2488 = vsel %vm2474, %v2439, %v1871
      %v2489 = vsel %vm2474, %v2440, %v1873
      %v2490 = vsel %vm2474, %v2441, %v1875
      %v2491 = vsel %vm2474, %v2442, %v1877
      %v2492 = vsel %vm2474, %v2443, %v1879
      %v2493 = vsel %vm2474, %v2444, %v1881
      %v2494 = vsel %vm2474, %v2445, %v1883
      %v2495 = vsel %vm2474, %v2446, %v1885
      %v2496 = vsel %vm2474, %v2447, %v1887
      %v2497 = vsel %vm2474, %v2448, %v1889
      %v2498 = vsel %vm2474, %v2449, %v1891
      %v2499 = vsel %vm2474, %v2450, %v1893
      %v2500 = vsel %vm2474, %v2451, %v1895
      %v2501 = vsel %vm2474, %v2452, %v1897
      %v2502 = vsel %vm2474, %v2453, %v1899
      %v2503 = vsel %vm2474, %v2454, %v1901
      %v2504 = vsel %vm2474, %v2455, %v1903
      %v2505 = vsel %vm2474, %v2456, %v1905
      %v2506 = vsel %vm2474, %v2457, %v1907
      %v2507 = vsel %vm2474, %v2458, %v1909
      %v2508 = vsel %vm2474, %v2459, %v1911
      %v2509 = vsel %vm2474, %v2460, %v1913
      %v2510 = vsel %vm2474, %v2461, %v1915
      %v2511 = vsel %vm2474, %v2462, %v1917
      %v2512 = vsel %vm2474, %v2463, %v1919
      %v2513 = vsel %vm2474, %v2464, %v1921
      %v2514 = vsel %vm2474, %v2465, %v1923
      %v2515 = vsel %vm2474, %v2466, %v1925
      %v2516 = vsel %vm2474, %v2467, %v1927
      %v2517 = vsel %vm2474, %v2468, %v1929
      %v2518 = vsel %vm2474, %v2469, %v1931
      %v2519 = vsel %vm2474, %v2470, %v1933
      %v2520 = vsel %vm2474, %v2471, %v1935
      %v2521 = vsel %vm2474, %v2472, %v1937
      %v2522 = vsel %vm2474, %v2473, %v1939
      %vm2523 = vcmask 523264
      %v2524 = vsel %vm2523, %v2475, %v2037
      %v2525 = vsel %vm2523, %v2476, %v2039
      %v2526 = vsel %vm2523, %v2477, %v2041
      %v2527 = vsel %vm2523, %v2478, %v2043
      %v2528 = vsel %vm2523, %v2479, %v2045
      %v2529 = vsel %vm2523, %v2480, %v2047
      %v2530 = vsel %vm2523, %v2481, %v2049
      %v2531 = vsel %vm2523, %v2482, %v2051
      %v2532 = vsel %vm2523, %v2483, %v2053
      %v2533 = vsel %vm2523, %v2484, %v2055
      %v2534 = vsel %vm2523, %v2485, %v2057
      %v2535 = vsel %vm2523, %v2486, %v2059
      %v2536 = vsel %vm2523, %v2487, %v2061
      %v2537 = vsel %vm2523, %v2488, %v2063
      %v2538 = vsel %vm2523, %v2489, %v2065
      %v2539 = vsel %vm2523, %v2490, %v2067
      %v2540 = vsel %vm2523, %v2491, %v2069
      %v2541 = vsel %vm2523, %v2492, %v2071
      %v2542 = vsel %vm2523, %v2493, %v2073
      %v2543 = vsel %vm2523, %v2494, %v2075
      %v2544 = vsel %vm2523, %v2495, %v2077
      %v2545 = vsel %vm2523, %v2496, %v2079
      %v2546 = vsel %vm2523, %v2497, %v2081
      %v2547 = vsel %vm2523, %v2498, %v2083
      %v2548 = vsel %vm2523, %v2499, %v2085
      %v2549 = vsel %vm2523, %v2500, %v2087
      %v2550 = vsel %vm2523, %v2501, %v2089
      %v2551 = vsel %vm2523, %v2502, %v2091
      %v2552 = vsel %vm2523, %v2503, %v2093
      %v2553 = vsel %vm2523, %v2504, %v2095
      %v2554 = vsel %vm2523, %v2505, %v2097
      %v2555 = vsel %vm2523, %v2506, %v2099
      %v2556 = vsel %vm2523, %v2507, %v2101
      %v2557 = vsel %vm2523, %v2508, %v2103
      %v2558 = vsel %vm2523, %v2509, %v2105
      %v2559 = vsel %vm2523, %v2510, %v2107
      %v2560 = vsel %vm2523, %v2511, %v2109
      %v2561 = vsel %vm2523, %v2512, %v2111
      %v2562 = vsel %vm2523, %v2513, %v2113
      %v2563 = vsel %vm2523, %v2514, %v2115
      %v2564 = vsel %vm2523, %v2515, %v2117
      %v2565 = vsel %vm2523, %v2516, %v2119
      %v2566 = vsel %vm2523, %v2517, %v2121
      %v2567 = vsel %vm2523, %v2518, %v2123
      %v2568 = vsel %vm2523, %v2519, %v2125
      %v2569 = vsel %vm2523, %v2520, %v2127
      %v2570 = vsel %vm2523, %v2521, %v2129
      %v2571 = vsel %vm2523, %v2522, %v2131
      %v2572 = vld [vmem:[%s1] sm:$0xff]
      %v2573 = vld [vmem:[%s1 + $0x8] sm:$0xff]
      %v2574 = vld [vmem:[%s1 + $0x10] sm:$0xff]
      %v2575 = vld [vmem:[%s1 + $0x18] sm:$0xff]
      %v2576 = vld [vmem:[%s1 + $0x20] sm:$0xff]
      %v2577 = vld [vmem:[%s1 + $0x28] sm:$0xff]
      %v2578 = vld [vmem:[%s1 + $0x30] sm:$0xff]
      %v2579 = vld [vmem:[%s1 + $0x38] sm:$0xff]
      %v2580 = vld [vmem:[%s1 + $0x40] sm:$0xff]
      %v2581 = vld [vmem:[%s2] sm:$0x1]
      %v2583 = vlaneseq
      %v2584 = vshrl.u32 %v2583, 7
      %v2585 = vsub.s32 0, %v2584
      %v2586 = vrot.slane %v2581, %v2585
      %vm2588 = vcmask 588800
      %v2590 = vsel %vm2588, %v2524, 0
      %v2593 = vsel %vm2588, %v2525, 0
      %v2596 = vsel %vm2588, %v2526, 0
      %v2599 = vsel %vm2588, %v2527, 0
      %v2602 = vsel %vm2588, %v2528, 0
      %v2605 = vsel %vm2588, %v2529, 0
      %v2608 = vsel %vm2588, %v2530, 0
      %v2611 = vsel %vm2588, %v2531, 0
      %v2614 = vsel %vm2588, %v2532, 0
      %v2617 = vsel %vm2588, %v2533, 0
      %v2620 = vsel %vm2588, %v2534, 0
      %v2623 = vsel %vm2588, %v2535, 0
      %v2626 = vsel %vm2588, %v2536, 0
      %v2629 = vsel %vm2588, %v2537, 0
      %v2632 = vsel %vm2588, %v2538, 0
      %v2635 = vsel %vm2588, %v2539, 0
      %v2638 = vsel %vm2588, %v2540, 0
      %v2641 = vsel %vm2588, %v2541, 0
      %v2644 = vsel %vm2588, %v2542, 0
      %v2647 = vsel %vm2588, %v2543, 0
      %v2650 = vsel %vm2588, %v2544, 0
      %v2653 = vsel %vm2588, %v2545, 0
      %v2656 = vsel %vm2588, %v2546, 0
      %v2659 = vsel %vm2588, %v2547, 0
      %v2662 = vsel %vm2588, %v2548, 0
      %v2665 = vsel %vm2588, %v2549, 0
      %v2668 = vsel %vm2588, %v2550, 0
      %v2671 = vsel %vm2588, %v2551, 0
      %v2674 = vsel %vm2588, %v2552, 0
      %v2677 = vsel %vm2588, %v2553, 0
      %v2680 = vsel %vm2588, %v2554, 0
      %v2683 = vsel %vm2588, %v2555, 0
      %v2686 = vsel %vm2588, %v2556, 0
      %v2689 = vsel %vm2588, %v2557, 0
      %v2692 = vsel %vm2588, %v2558, 0
      %v2695 = vsel %vm2588, %v2559, 0
      %v2698 = vsel %vm2588, %v2560, 0
      %v2701 = vsel %vm2588, %v2561, 0
      %v2704 = vsel %vm2588, %v2562, 0
      %v2707 = vsel %vm2588, %v2563, 0
      %v2710 = vsel %vm2588, %v2564, 0
      %v2713 = vsel %vm2588, %v2565, 0
      %v2716 = vsel %vm2588, %v2566, 0
      %v2719 = vsel %vm2588, %v2567, 0
      %v2722 = vsel %vm2588, %v2568, 0
      %v2725 = vsel %vm2588, %v2569, 0
      %v2728 = vsel %vm2588, %v2570, 0
      %v2731 = vsel %vm2588, %v2571, 0
      %2733 = vmatprep.subr.mxu0 0.0
      %2734 = vmatpush1.msra.mxu0 %v2572
      %2735 = vmatprep.subr.mxu0 0.0
      %2736 = vmatpush1.msra.mxu0 %v2573
      %2737 = vmatprep.subr.mxu0 0.0
      %2738 = vmatpush1.msra.mxu0 %v2574
      %2739 = vmatprep.subr.mxu0 0.0
      %2740 = vmatpush1.msra.mxu0 %v2575
      %2741 = vmatprep.subr.mxu0 0.0
      %2742 = vmatpush1.msra.mxu0 %v2576
      %2743 = vmatprep.subr.mxu0 0.0
      %2744 = vmatpush1.msra.mxu0 %v2577
      %2745 = vmatprep.subr.mxu0 0.0
      %2746 = vmatpush1.msra.mxu0 %v2578
      %2747 = vmatprep.subr.mxu0 0.0
      %2748 = vmatpush1.msra.mxu0 %v2579
      %2749 = vmatprep.subr.mxu0 0.0
      %2750 = vmatpush1.msra.mxu0 %v2580
      %2751 = vmatprep.subr.mxu0 0.0
      %2752 = vmatpush1.msra.mxu0 0.0
      %2753 = vmatprep.subr.mxu0 0.0
      %2754 = vmatpush1.msra.mxu0 0.0
      %2755 = vmatprep.subr.mxu0 0.0
      %2756 = vmatpush1.msra.mxu0 0.0
      %2757 = vmatprep.subr.mxu0 0.0
      %2758 = vmatpush1.msra.mxu0 0.0
      %2759 = vmatprep.subr.mxu0 0.0
      %2760 = vmatpush1.msra.mxu0 0.0
      %2761 = vmatprep.subr.mxu0 0.0
      %2762 = vmatpush1.msra.mxu0 0.0
      %2763 = vmatprep.subr.mxu0 0.0
      %2764 = vmatpush1.msra.mxu0 0.0
      %2765 = vmatprep.subr.mxu0 0.0
      %2766 = vmatpush1.msra.mxu0 0.0
      %2767 = vmatprep.subr.mxu0 0.0
      %2768 = vmatpush1.msra.mxu0 0.0
      %2769 = vmatprep.subr.mxu0 0.0
      %2770 = vmatpush1.msra.mxu0 0.0
      %2771 = vmatprep.subr.mxu0 0.0
      %2772 = vmatpush1.msra.mxu0 0.0
      %2773 = vmatprep.subr.mxu0 0.0
      %2774 = vmatpush1.msra.mxu0 0.0
      %2775 = vmatprep.subr.mxu0 0.0
      %2776 = vmatpush1.msra.mxu0 0.0
      %2777 = vmatprep.subr.mxu0 0.0
      %2778 = vmatpush1.msra.mxu0 0.0
      %2779 = vmatprep.subr.mxu0 0.0
      %2780 = vmatpush1.msra.mxu0 0.0
      %2781 = vmatprep.subr.mxu0 0.0
      %2782 = vmatpush1.msra.mxu0 0.0
      %2783 = vmatprep.subr.mxu0 0.0
      %2784 = vmatpush1.msra.mxu0 0.0
      %2785 = vmatprep.subr.mxu0 0.0
      %2786 = vmatpush1.msra.mxu0 0.0
      %2787 = vmatprep.subr.mxu0 0.0
      %2788 = vmatpush1.msra.mxu0 0.0
      %2789 = vmatprep.subr.mxu0 0.0
      %2790 = vmatpush1.msra.mxu0 0.0
      %2791 = vmatprep.subr.mxu0 0.0
      %2792 = vmatpush1.msra.mxu0 0.0
      %2793 = vmatprep.subr.mxu0 0.0
      %2794 = vmatpush1.msra.mxu0 0.0
      %2795 = vmatprep.subr.mxu0 0.0
      %2796 = vmatpush1.msra.mxu0 0.0
      %2797 = vmatprep.mubr.f32.mxu0 0.0
      %2798 = vmatmul.mubr.f32.gmra.mrb[0].mxu0 %v2590
      %v2799 = vpop.f32.mrb[0].mxu0
      %v2800 = vadd.f32 %v2586, %v2799
      %v2801 = vpop.f32.mrb[0].mxu0
      %2802 = vmatprep.mubr.f32.mxu0 0.0
      %2803 = vmatmul.mubr.f32.gmra.mrb[0].mxu0 %v2593
      %v2804 = vpop.f32.mrb[0].mxu0
      %v2805 = vadd.f32 %v2586, %v2804
      %v2806 = vpop.f32.mrb[0].mxu0
      %2807 = vmatprep.mubr.f32.mxu0 0.0
      %2808 = vmatmul.mubr.f32.gmra.mrb[0].mxu0 %v2596
      %v2809 = vpop.f32.mrb[0].mxu0
      %v2810 = vadd.f32 %v2586, %v2809
      %v2811 = vpop.f32.mrb[0].mxu0
      %2812 = vmatprep.mubr.f32.mxu0 0.0
      %2813 = vmatmul.mubr.f32.gmra.mrb[0].mxu0 %v2599
      %v2814 = vpop.f32.mrb[0].mxu0
      %v2815 = vadd.f32 %v2586, %v2814
      %v2816 = vpop.f32.mrb[0].mxu0
      %2817 = vmatprep.mubr.f32.mxu0 0.0
      %2818 = vmatmul.mubr.f32.gmra.mrb[0].mxu0 %v2602
      %v2819 = vpop.f32.mrb[0].mxu0
      %v2820 = vadd.f32 %v2586, %v2819
      %v2821 = vpop.f32.mrb[0].mxu0
      %2822 = vmatprep.mubr.f32.mxu0 0.0
      %2823 = vmatmul.mubr.f32.gmra.mrb[0].mxu0 %v2605
      %v2824 = vpop.f32.mrb[0].mxu0
      %v2825 = vadd.f32 %v2586, %v2824
      %v2826 = vpop.f32.mrb[0].mxu0
      %2827 = vmatprep.mubr.f32.mxu0 0.0
      %2828 = vmatmul.mubr.f32.gmra.mrb[0].mxu0 %v2608
      %v2829 = vpop.f32.mrb[0].mxu0
      %v2830 = vadd.f32 %v2586, %v2829
      %v2831 = vpop.f32.mrb[0].mxu0
      %2832 = vmatprep.mubr.f32.mxu0 0.0
      %2833 = vmatmul.mubr.f32.gmra.mrb[0].mxu0 %v2611
      %v2834 = vpop.f32.mrb[0].mxu0
      %v2835 = vadd.f32 %v2586, %v2834
      %v2836 = vpop.f32.mrb[0].mxu0
      %2837 = vmatprep.mubr.f32.mxu0 0.0
      %2838 = vmatmul.mubr.f32.gmra.mrb[0].mxu0 %v2614
      %v2839 = vpop.f32.mrb[0].mxu0
      %v2840 = vadd.f32 %v2586, %v2839
      %v2841 = vpop.f32.mrb[0].mxu0
      %2842 = vmatprep.mubr.f32.mxu0 0.0
      %2843 = vmatmul.mubr.f32.gmra.mrb[0].mxu0 %v2617
      %v2844 = vpop.f32.mrb[0].mxu0
      %v2845 = vadd.f32 %v2586, %v2844
      %v2846 = vpop.f32.mrb[0].mxu0
      %2847 = vmatprep.mubr.f32.mxu0 0.0
      %2848 = vmatmul.mubr.f32.gmra.mrb[0].mxu0 %v2620
      %v2849 = vpop.f32.mrb[0].mxu0
      %v2850 = vadd.f32 %v2586, %v2849
      %v2851 = vpop.f32.mrb[0].mxu0
      %2852 = vmatprep.mubr.f32.mxu0 0.0
      %2853 = vmatmul.mubr.f32.gmra.mrb[0].mxu0 %v2623
      %v2854 = vpop.f32.mrb[0].mxu0
      %v2855 = vadd.f32 %v2586, %v2854
      %v2856 = vpop.f32.mrb[0].mxu0
      %2857 = vmatprep.mubr.f32.mxu0 0.0
      %2858 = vmatmul.mubr.f32.gmra.mrb[0].mxu0 %v2626
      %v2859 = vpop.f32.mrb[0].mxu0
      %v2860 = vadd.f32 %v2586, %v2859
      %v2861 = vpop.f32.mrb[0].mxu0
      %2862 = vmatprep.mubr.f32.mxu0 0.0
      %2863 = vmatmul.mubr.f32.gmra.mrb[0].mxu0 %v2629
      %v2864 = vpop.f32.mrb[0].mxu0
      %v2865 = vadd.f32 %v2586, %v2864
      %v2866 = vpop.f32.mrb[0].mxu0
      %2867 = vmatprep.mubr.f32.mxu0 0.0
      %2868 = vmatmul.mubr.f32.gmra.mrb[0].mxu0 %v2632
      %v2869 = vpop.f32.mrb[0].mxu0
      %v2870 = vadd.f32 %v2586, %v2869
      %v2871 = vpop.f32.mrb[0].mxu0
      %2872 = vmatprep.mubr.f32.mxu0 0.0
      %2873 = vmatmul.mubr.f32.gmra.mrb[0].mxu0 %v2635
      %v2874 = vpop.f32.mrb[0].mxu0
      %v2875 = vadd.f32 %v2586, %v2874
      %v2876 = vpop.f32.mrb[0].mxu0
      %2877 = vmatprep.mubr.f32.mxu0 0.0
      %2878 = vmatmul.mubr.f32.gmra.mrb[0].mxu0 %v2638
      %v2879 = vpop.f32.mrb[0].mxu0
      %v2880 = vadd.f32 %v2586, %v2879
      %v2881 = vpop.f32.mrb[0].mxu0
      %2882 = vmatprep.mubr.f32.mxu0 0.0
      %2883 = vmatmul.mubr.f32.gmra.mrb[0].mxu0 %v2641
      %v2884 = vpop.f32.mrb[0].mxu0
      %v2885 = vadd.f32 %v2586, %v2884
      %v2886 = vpop.f32.mrb[0].mxu0
      %2887 = vmatprep.mubr.f32.mxu0 0.0
      %2888 = vmatmul.mubr.f32.gmra.mrb[0].mxu0 %v2644
      %v2889 = vpop.f32.mrb[0].mxu0
      %v2890 = vadd.f32 %v2586, %v2889
      %v2891 = vpop.f32.mrb[0].mxu0
      %2892 = vmatprep.mubr.f32.mxu0 0.0
      %2893 = vmatmul.mubr.f32.gmra.mrb[0].mxu0 %v2647
      %v2894 = vpop.f32.mrb[0].mxu0
      %v2895 = vadd.f32 %v2586, %v2894
      %v2896 = vpop.f32.mrb[0].mxu0
      %2897 = vmatprep.mubr.f32.mxu0 0.0
      %2898 = vmatmul.mubr.f32.gmra.mrb[0].mxu0 %v2650
      %v2899 = vpop.f32.mrb[0].mxu0
      %v2900 = vadd.f32 %v2586, %v2899
      %v2901 = vpop.f32.mrb[0].mxu0
      %2902 = vmatprep.mubr.f32.mxu0 0.0
      %2903 = vmatmul.mubr.f32.gmra.mrb[0].mxu0 %v2653
      %v2904 = vpop.f32.mrb[0].mxu0
      %v2905 = vadd.f32 %v2586, %v2904
      %v2906 = vpop.f32.mrb[0].mxu0
      %2907 = vmatprep.mubr.f32.mxu0 0.0
      %2908 = vmatmul.mubr.f32.gmra.mrb[0].mxu0 %v2656
      %v2909 = vpop.f32.mrb[0].mxu0
      %v2910 = vadd.f32 %v2586, %v2909
      %v2911 = vpop.f32.mrb[0].mxu0
      %2912 = vmatprep.mubr.f32.mxu0 0.0
      %2913 = vmatmul.mubr.f32.gmra.mrb[0].mxu0 %v2659
      %v2914 = vpop.f32.mrb[0].mxu0
      %v2915 = vadd.f32 %v2586, %v2914
      %v2916 = vpop.f32.mrb[0].mxu0
      %2917 = vmatprep.mubr.f32.mxu0 0.0
      %2918 = vmatmul.mubr.f32.gmra.mrb[0].mxu0 %v2662
      %v2919 = vpop.f32.mrb[0].mxu0
      %v2920 = vadd.f32 %v2586, %v2919
      %v2921 = vpop.f32.mrb[0].mxu0
      %2922 = vmatprep.mubr.f32.mxu0 0.0
      %2923 = vmatmul.mubr.f32.gmra.mrb[0].mxu0 %v2665
      %v2924 = vpop.f32.mrb[0].mxu0
      %v2925 = vadd.f32 %v2586, %v2924
      %v2926 = vpop.f32.mrb[0].mxu0
      %2927 = vmatprep.mubr.f32.mxu0 0.0
      %2928 = vmatmul.mubr.f32.gmra.mrb[0].mxu0 %v2668
      %v2929 = vpop.f32.mrb[0].mxu0
      %v2930 = vadd.f32 %v2586, %v2929
      %v2931 = vpop.f32.mrb[0].mxu0
      %2932 = vmatprep.mubr.f32.mxu0 0.0
      %2933 = vmatmul.mubr.f32.gmra.mrb[0].mxu0 %v2671
      %v2934 = vpop.f32.mrb[0].mxu0
      %v2935 = vadd.f32 %v2586, %v2934
      %v2936 = vpop.f32.mrb[0].mxu0
      %2937 = vmatprep.mubr.f32.mxu0 0.0
      %2938 = vmatmul.mubr.f32.gmra.mrb[0].mxu0 %v2674
      %v2939 = vpop.f32.mrb[0].mxu0
      %v2940 = vadd.f32 %v2586, %v2939
      %v2941 = vpop.f32.mrb[0].mxu0
      %2942 = vmatprep.mubr.f32.mxu0 0.0
      %2943 = vmatmul.mubr.f32.gmra.mrb[0].mxu0 %v2677
      %v2944 = vpop.f32.mrb[0].mxu0
      %v2945 = vadd.f32 %v2586, %v2944
      %v2946 = vpop.f32.mrb[0].mxu0
      %2947 = vmatprep.mubr.f32.mxu0 0.0
      %2948 = vmatmul.mubr.f32.gmra.mrb[0].mxu0 %v2680
      %v2949 = vpop.f32.mrb[0].mxu0
      %v2950 = vadd.f32 %v2586, %v2949
      %v2951 = vpop.f32.mrb[0].mxu0
      %2952 = vmatprep.mubr.f32.mxu0 0.0
      %2953 = vmatmul.mubr.f32.gmra.mrb[0].mxu0 %v2683
      %v2954 = vpop.f32.mrb[0].mxu0
      %v2955 = vadd.f32 %v2586, %v2954
      %v2956 = vpop.f32.mrb[0].mxu0
      %2957 = vmatprep.mubr.f32.mxu0 0.0
      %2958 = vmatmul.mubr.f32.gmra.mrb[0].mxu0 %v2686
      %v2959 = vpop.f32.mrb[0].mxu0
      %v2960 = vadd.f32 %v2586, %v2959
      %v2961 = vpop.f32.mrb[0].mxu0
      %2962 = vmatprep.mubr.f32.mxu0 0.0
      %2963 = vmatmul.mubr.f32.gmra.mrb[0].mxu0 %v2689
      %v2964 = vpop.f32.mrb[0].mxu0
      %v2965 = vadd.f32 %v2586, %v2964
      %v2966 = vpop.f32.mrb[0].mxu0
      %2967 = vmatprep.mubr.f32.mxu0 0.0
      %2968 = vmatmul.mubr.f32.gmra.mrb[0].mxu0 %v2692
      %v2969 = vpop.f32.mrb[0].mxu0
      %v2970 = vadd.f32 %v2586, %v2969
      %v2971 = vpop.f32.mrb[0].mxu0
      %2972 = vmatprep.mubr.f32.mxu0 0.0
      %2973 = vmatmul.mubr.f32.gmra.mrb[0].mxu0 %v2695
      %v2974 = vpop.f32.mrb[0].mxu0
      %v2975 = vadd.f32 %v2586, %v2974
      %v2976 = vpop.f32.mrb[0].mxu0
      %2977 = vmatprep.mubr.f32.mxu0 0.0
      %2978 = vmatmul.mubr.f32.gmra.mrb[0].mxu0 %v2698
      %v2979 = vpop.f32.mrb[0].mxu0
      %v2980 = vadd.f32 %v2586, %v2979
      %v2981 = vpop.f32.mrb[0].mxu0
      %2982 = vmatprep.mubr.f32.mxu0 0.0
      %2983 = vmatmul.mubr.f32.gmra.mrb[0].mxu0 %v2701
      %v2984 = vpop.f32.mrb[0].mxu0
      %v2985 = vadd.f32 %v2586, %v2984
      %v2986 = vpop.f32.mrb[0].mxu0
      %2987 = vmatprep.mubr.f32.mxu0 0.0
      %2988 = vmatmul.mubr.f32.gmra.mrb[0].mxu0 %v2704
      %v2989 = vpop.f32.mrb[0].mxu0
      %v2990 = vadd.f32 %v2586, %v2989
      %v2991 = vpop.f32.mrb[0].mxu0
      %2992 = vmatprep.mubr.f32.mxu0 0.0
      %2993 = vmatmul.mubr.f32.gmra.mrb[0].mxu0 %v2707
      %v2994 = vpop.f32.mrb[0].mxu0
      %v2995 = vadd.f32 %v2586, %v2994
      %v2996 = vpop.f32.mrb[0].mxu0
      %2997 = vmatprep.mubr.f32.mxu0 0.0
      %2998 = vmatmul.mubr.f32.gmra.mrb[0].mxu0 %v2710
      %v2999 = vpop.f32.mrb[0].mxu0
      %v3000 = vadd.f32 %v2586, %v2999
      %v3001 = vpop.f32.mrb[0].mxu0
      %3002 = vmatprep.mubr.f32.mxu0 0.0
      %3003 = vmatmul.mubr.f32.gmra.mrb[0].mxu0 %v2713
      %v3004 = vpop.f32.mrb[0].mxu0
      %v3005 = vadd.f32 %v2586, %v3004
      %v3006 = vpop.f32.mrb[0].mxu0
      %3007 = vmatprep.mubr.f32.mxu0 0.0
      %3008 = vmatmul.mubr.f32.gmra.mrb[0].mxu0 %v2716
      %v3009 = vpop.f32.mrb[0].mxu0
      %v3010 = vadd.f32 %v2586, %v3009
      %v3011 = vpop.f32.mrb[0].mxu0
      %3012 = vmatprep.mubr.f32.mxu0 0.0
      %3013 = vmatmul.mubr.f32.gmra.mrb[0].mxu0 %v2719
      %v3014 = vpop.f32.mrb[0].mxu0
      %v3015 = vadd.f32 %v2586, %v3014
      %v3016 = vpop.f32.mrb[0].mxu0
      %3017 = vmatprep.mubr.f32.mxu0 0.0
      %3018 = vmatmul.mubr.f32.gmra.mrb[0].mxu0 %v2722
      %v3019 = vpop.f32.mrb[0].mxu0
      %v3020 = vadd.f32 %v2586, %v3019
      %v3021 = vpop.f32.mrb[0].mxu0
      %3022 = vmatprep.mubr.f32.mxu0 0.0
      %3023 = vmatmul.mubr.f32.gmra.mrb[0].mxu0 %v2725
      %v3024 = vpop.f32.mrb[0].mxu0
      %v3025 = vadd.f32 %v2586, %v3024
      %v3026 = vpop.f32.mrb[0].mxu0
      %3027 = vmatprep.mubr.f32.mxu0 0.0
      %3028 = vmatmul.mubr.f32.gmra.mrb[0].mxu0 %v2728
      %v3029 = vpop.f32.mrb[0].mxu0
      %v3030 = vadd.f32 %v2586, %v3029
      %v3031 = vpop.f32.mrb[0].mxu0
      %3032 = vmatprep.mubr.f32.mxu0 0.0
      %3033 = vmatmul.mubr.f32.gmra.mrb[0].mxu0 %v2731
      %v3034 = vpop.f32.mrb[0].mxu0
      %v3035 = vadd.f32 %v2586, %v3034
      %v3036 = vpop.f32.mrb[0].mxu0
      %3037 = vdwg.mxu0
      %3038 = vst [vmem:[%s192] sm:$0xff] %v2800
      %3039 = vst [vmem:[%s192 + $0x8] sm:$0xff] %v2805
      %3040 = vst [vmem:[%s192 + $0x10] sm:$0xff] %v2810
      %3041 = vst [vmem:[%s192 + $0x18] sm:$0xff] %v2815
      %3042 = vst [vmem:[%s192 + $0x20] sm:$0xff] %v2820
      %3043 = vst [vmem:[%s192 + $0x28] sm:$0xff] %v2825
      %3044 = vst [vmem:[%s192 + $0x30] sm:$0xff] %v2830
      %3045 = vst [vmem:[%s192 + $0x38] sm:$0xff] %v2835
      %3046 = vst [vmem:[%s192 + $0x40] sm:$0xff] %v2840
      %3047 = vst [vmem:[%s192 + $0x48] sm:$0xff] %v2845
      %3048 = vst [vmem:[%s192 + $0x50] sm:$0xff] %v2850
      %3049 = vst [vmem:[%s192 + $0x58] sm:$0xff] %v2855
      %3050 = vst [vmem:[%s192 + $0x60] sm:$0xff] %v2860
      %3051 = vst [vmem:[%s192 + $0x68] sm:$0xff] %v2865
      %3052 = vst [vmem:[%s192 + $0x70] sm:$0xff] %v2870
      %3053 = vst [vmem:[%s192 + $0x78] sm:$0xff] %v2875
      %3054 = vst [vmem:[%s192 + $0x80] sm:$0xff] %v2880
      %3055 = vst [vmem:[%s192 + $0x88] sm:$0xff] %v2885
      %3056 = vst [vmem:[%s192 + $0x90] sm:$0xff] %v2890
      %3057 = vst [vmem:[%s192 + $0x98] sm:$0xff] %v2895
      %3058 = vst [vmem:[%s192 + $0xa0] sm:$0xff] %v2900
      %3059 = vst [vmem:[%s192 + $0xa8] sm:$0xff] %v2905
      %3060 = vst [vmem:[%s192 + $0xb0] sm:$0xff] %v2910
      %3061 = vst [vmem:[%s192 + $0xb8] sm:$0xff] %v2915
      %3062 = vst [vmem:[%s192 + $0xc0] sm:$0xff] %v2920
      %3063 = vst [vmem:[%s192 + $0xc8] sm:$0xff] %v2925
      %3064 = vst [vmem:[%s192 + $0xd0] sm:$0xff] %v2930
      %3065 = vst [vmem:[%s192 + $0xd8] sm:$0xff] %v2935
      %3066 = vst [vmem:[%s192 + $0xe0] sm:$0xff] %v2940
      %3067 = vst [vmem:[%s192 + $0xe8] sm:$0xff] %v2945
      %3068 = vst [vmem:[%s192 + $0xf0] sm:$0xff] %v2950
      %3069 = vst [vmem:[%s192 + $0xf8] sm:$0xff] %v2955
      %3070 = vst [vmem:[%s192 + $0x100] sm:$0xff] %v2960
      %3071 = vst [vmem:[%s192 + $0x108] sm:$0xff] %v2965
      %3072 = vst [vmem:[%s192 + $0x110] sm:$0xff] %v2970
      %3073 = vst [vmem:[%s192 + $0x118] sm:$0xff] %v2975
      %3074 = vst [vmem:[%s192 + $0x120] sm:$0xff] %v2980
      %3075 = vst [vmem:[%s192 + $0x128] sm:$0xff] %v2985
      %3076 = vst [vmem:[%s192 + $0x130] sm:$0xff] %v2990
      %3077 = vst [vmem:[%s192 + $0x138] sm:$0xff] %v2995
      %3078 = vst [vmem:[%s192 + $0x140] sm:$0xff] %v3000
      %3079 = vst [vmem:[%s192 + $0x148] sm:$0xff] %v3005
      %3080 = vst [vmem:[%s192 + $0x150] sm:$0xff] %v3010
      %3081 = vst [vmem:[%s192 + $0x158] sm:$0xff] %v3015
      %3082 = vst [vmem:[%s192 + $0x160] sm:$0xff] %v3020
      %3083 = vst [vmem:[%s192 + $0x168] sm:$0xff] %v3025
      %3084 = vst [vmem:[%s192 + $0x170] sm:$0xff] %v3030
      %3085 = vst [vmem:[%s192 + $0x178] sm:$0xff] %v3035
      %s3086 = smul.u32 48, %s19
      %p3087 = scmp.lt.s32.totalorder %s18, 1
      %s3088 = scalar_select %p3087, %s18, 1
      %p3089 = scmp.lt.s32.totalorder %s3086, 47
      %s3090 = scalar_select %p3089, %s3086, 47
      %s3091 = smul.addr %s3088, 48
      %s3092 = sadd.s32 %s3090, %s3091
      %s3093 = smul.addr %s3092, 8
      %s3094 = scalar_lea.vmem %s3, %s3093
      // Predicated region
      $region33: #{basic_conv2d.1} parent=31 // pred_check
        %p3095 = pneg %p114
      $region34: #{basic_conv2d.1} parent=31 // pred_check_branch
        %3097 = sbr.rel (%p3095) target = $region36
      $region35: #{basic_conv2d.1} parent=31 // pred_region
        %s3098 = smul.u32 48, %s19
      $region36: #{basic_conv2d.1} parent=31 // pred_fallthru
        _
    $region32: #{basic_conv2d.1} parent=5 // pred_fallthru
      _
    %p3099 = scmp.le.s32.totalorder 2, %s9
    // Predicated region
    $region37: #{basic_conv2d.1} parent=5 // pred_check
      %p3100 = pneg %p3099
    $region38: #{basic_conv2d.1} parent=5 // pred_check_branch
      %3102 = sbr.rel (%p3100) target = $region40
    $region39: #{basic_conv2d.1} parent=5 // pred_region
      %s3103 = ssub.s32 %s9, 2
      // Predicated region
      $region41: #{basic_conv2d.1} parent=39 // pred_check
        %p3104 = pneg %p120
      $region42: #{basic_conv2d.1} parent=39 // pred_check_branch
        %3106 = sbr.rel (%p3104) target = $region44
      $region43: #{basic_conv2d.1} parent=39 // pred_region
        %s3107 = smul.u32 48, %s21
        %p3108 = scmp.lt.s32.totalorder %s20, 1
        %s3109 = scalar_select %p3108, %s20, 1
        %p3110 = scmp.lt.s32.totalorder %s3107, 47
        %s3111 = scalar_select %p3110, %s3107, 47
        %s3112 = smul.addr %s3109, 48
        %s3113 = sadd.s32 %s3111, %s3112
        %s3114 = smul.addr %s3113, 8
        %s3115 = scalar_lea.vmem %s3, %s3114
      $region44: #{basic_conv2d.1} parent=39 // pred_fallthru
        _
    $region40: #{basic_conv2d.1} parent=5 // pred_fallthru
      _
  $region6: #{basic_conv2d.1} parent=0 // loop_footer
    %s13 = sadd.s32 1, %s9
  $region7: #{basic_conv2d.1} parent=0 // loop_footer_branch
    %8 = sbr.rel target = $region3
  $region8: #{basic_conv2d.1} parent=0 // loop_exit
    _

</llo_original>
